<compile_context>
chip_gen: v6e
topology: v6e:2x2x1
jax: 0.10.0
libtpu: 0.0.40
codegen_flags: <defaults>
</compile_context>

<pallas_src>
import numpy as np
import jax
import jax.numpy as jnp
from jax.experimental import pallas as pl
from jax.experimental.pallas import tpu as pltpu


# ---------------------------------------------------------------------------
# Host-side (glue): 1-D operators for adaptive pool / bilinear upsample.
# ---------------------------------------------------------------------------
def _adaptive_pool_matrix(in_size, out_size):
    """Row-stochastic matrix replicating nn.AdaptiveAvgPool2d bin rule (1-D)."""
    m = np.zeros((out_size, in_size), dtype=np.float32)
    for i in range(out_size):
        start = (i * in_size) // out_size
        end = -((-(i + 1) * in_size) // out_size)  # ceil((i+1)*in/out)
        m[i, start:end] = 1.0 / float(end - start)
    return m


def _bilinear_matrix_align_corners(in_size, out_size):
    """1-D interpolation matrix matching F.interpolate(..., align_corners=True)."""
    m = np.zeros((out_size, in_size), dtype=np.float32)
    if in_size == 1:
        m[:, 0] = 1.0
        return m
    scale = (in_size - 1) / (out_size - 1) if out_size > 1 else 0.0
    for i in range(out_size):
        src = i * scale
        i0 = min(int(np.floor(src)), in_size - 1)
        i1 = min(i0 + 1, in_size - 1)
        w1 = src - i0
        m[i, i0] += 1.0 - w1
        m[i, i1] += w1
    return m


# ---------------------------------------------------------------------------
# Fused Pallas kernel: identity copy + all pyramid branches in one call.
# ---------------------------------------------------------------------------
def _make_fused_kernel(c_in, c_out, offsets, p_sizes):
    nb = len(p_sizes)

    def kernel(*refs):
        # refs: x, poolT_all, w_all, b_bcast, upT_0..upT_{nb-1}, out
        x_ref, pool_ref, w_ref, b_ref = refs[:4]
        up_refs = refs[4:4 + nb]
        o_ref = refs[4 + nb]

        x = x_ref[0]  # (C, HW) f32

        # Identity part of torch.cat([x, ...]): write x straight into the slab.
        o_ref[0, 0:c_in, :] = x.astype(o_ref.dtype)

        # Adaptive average pooling for ALL branches in a single matmul.
        # pooled: (C, sum(ps^2))
        pooled = jnp.dot(x, pool_ref[...], preferred_element_type=jnp.float32)

        for i in range(nb):  # static Python loop over branches
            p = p_sizes[i]
            off = offsets[i]
            pooled_i = pooled[:, off:off + p]                      # (C, p)
            # 1x1 conv with BN folded in, + bias, + ReLU
            y = jnp.dot(w_ref[i], pooled_i,
                        preferred_element_type=jnp.float32)        # (Cout, p)
            y = jnp.maximum(y + b_ref[i][:, :p], 0.0)
            # Bilinear align_corners upsample back to (H, W)
            up = jnp.dot(y, up_refs[i][...],
                         preferred_element_type=jnp.float32)       # (Cout, HW)
            lo = c_in + i * c_out
            o_ref[0, lo:lo + c_out, :] = up.astype(o_ref.dtype)

    return kernel


# ---------------------------------------------------------------------------
# Module wrapper: parameters + cached linear operators + jitted forward.
# ---------------------------------------------------------------------------
class PyramidPoolingPallas:
    def __init__(self, in_channels, pool_sizes, height, width, key):
        self.in_channels = in_channels
        self.pool_sizes = tuple(pool_sizes)
        self.height = height
        self.width = width
        self.out_channels = int(in_channels / len(pool_sizes))
        self.eps = 1e-5
        nb = len(self.pool_sizes)

        # --- conv / BN parameters (inference-mode running stats) ------------
        keys = jax.random.split(key, nb)
        self.params = []
        bound = 1.0 / np.sqrt(in_channels)  # 1x1 conv: fan_in = in_channels
        for i, k in enumerate(keys):
            w = jax.random.uniform(
                k, (self.out_channels, in_channels),
                minval=-bound, maxval=bound, dtype=jnp.float32,
            )
            idx = jnp.arange(self.out_channels, dtype=jnp.float32)
            gamma = 1.0 + 0.10 * idx + 0.01 * i
            beta = 0.05 * idx - 0.02 * i
            mean = 0.02 * idx + 0.01 * i
            var = 1.0 + 0.03 * idx + 0.02 * i
            self.params.append((w, gamma, beta, mean, var))

        # --- cached linear operators (built once, kept on device) -----------
        self.p_sq = [ps * ps for ps in self.pool_sizes]
        self.p_total = int(sum(self.p_sq))
        self.offsets = [int(o) for o in np.cumsum([0] + self.p_sq[:-1])]
        p_max = max(self.p_sq)

        pool_blocks, up_list = [], []
        for ps in self.pool_sizes:
            ph = _adaptive_pool_matrix(height, ps)
            pw = _adaptive_pool_matrix(width, ps)
            pool_blocks.append(np.kron(ph, pw).T)                  # (HW, ps^2)
            uh = _bilinear_matrix_align_corners(ps, height)
            uw = _bilinear_matrix_align_corners(ps, width)
            up_list.append(jnp.asarray(np.kron(uh, uw).T))         # (ps^2, HW)
        self.pool_t_all = jnp.asarray(np.concatenate(pool_blocks, axis=1))
        self.up_t_list = up_list

        w_stack, b_stack = [], []
        for (wc, gamma, beta, mean, var) in self.params:
            scale = gamma / jnp.sqrt(var + self.eps)
            w_stack.append(wc * scale[:, None])                    # (Cout, C)
            b_eff = beta - mean * scale                            # (Cout,)
            b_stack.append(jnp.broadcast_to(b_eff[:, None],
                                            (self.out_channels, p_max)))
        self.w_all = jnp.stack(w_stack, axis=0)                    # (nb, Cout, C)
        self.b_bcast = jnp.stack(b_stack, axis=0)                  # (nb, Cout, Pmax)

        self.c_total = in_channels + nb * self.out_channels

        # --- build the fused kernel + jitted forward -------------------------
        kernel = _make_fused_kernel(in_channels, self.out_channels,
                                    self.offsets, self.p_sq)
        hw = height * width
        c_total = self.c_total
        p_total = self.p_total

        def forward(x2):
            n = x2.shape[0]
            in_specs = [
                pl.BlockSpec((1, in_channels, hw), lambda b: (b, 0, 0)),
                pl.BlockSpec((hw, p_total), lambda b: (0, 0)),
                pl.BlockSpec(self.w_all.shape, lambda b: (0, 0, 0)),
                pl.BlockSpec(self.b_bcast.shape, lambda b: (0, 0, 0)),
            ] + [
                pl.BlockSpec(u.shape, lambda b: (0, 0)) for u in self.up_t_list
            ]
            return pl.pallas_call(
                kernel,
                out_shape=jax.ShapeDtypeStruct((n, c_total, hw), jnp.float32),
                grid_spec=pltpu.PrefetchScalarGridSpec(
                    num_scalar_prefetch=0,
                    grid=(n,),
                    in_specs=in_specs,
                    out_specs=pl.BlockSpec((1, c_total, hw),
                                           lambda b: (b, 0, 0)),
                ),
                compiler_params=pltpu.CompilerParams(
                    dimension_semantics=("parallel",)),
            )(x2, self.pool_t_all, self.w_all, self.b_bcast, *self.up_t_list)

        self._forward = jax.jit(forward)

    def __call__(self, x):
        n, c, h, w = x.shape
        assert c == self.in_channels
        # torch.cat([x, out1..out4], dim=1) requires input spatial == target.
        assert (h, w) == (self.height, self.width), (
            "PyramidPooling requires input spatial size == (height, width)")
        out = self._forward(x.reshape(n, c, h * w))
        return out.reshape(n, self.c_total, self.height, self.width)


# ---------------------------------------------------------------------------
# Pure NumPy reference (un-folded BN) for a correctness check.
# ---------------------------------------------------------------------------
def _reference(x, module):
    x = np.asarray(x)
    _, _, h, w = x.shape
    outs = [x]
    for (wc, gamma, beta, mean, var), ps in zip(module.params, module.pool_sizes):
        ph = _adaptive_pool_matrix(h, ps)
        pw = _adaptive_pool_matrix(w, ps)
        pooled = np.einsum("ph,nchw,qw->ncpq", ph, x, pw)
        conv = np.einsum("oc,ncpq->nopq", np.asarray(wc), pooled)
        g = np.asarray(gamma)[None, :, None, None]
        b = np.asarray(beta)[None, :, None, None]
        m = np.asarray(mean)[None, :, None, None]
        v = np.asarray(var)[None, :, None, None]
        act = np.maximum(g * (conv - m) / np.sqrt(v + module.eps) + b, 0.0)
        uh = _bilinear_matrix_align_corners(ps, module.height)
        uw = _bilinear_matrix_align_corners(ps, module.width)
        outs.append(np.einsum("Hp,nopq,Wq->noHW", uh, act, uw))
    return np.concatenate(outs, axis=1)


if __name__ == "__main__":
    key = jax.random.PRNGKey(0)
    kx, kp = jax.random.split(key)

    n, c, h, w = 2, 8, 16, 16
    pool_sizes = (6, 3, 2, 1)

    x = jax.random.normal(kx, (n, c, h, w), dtype=jnp.float32)
    module = PyramidPoolingPallas(c, pool_sizes, height=h, width=w, key=kp)

    out = module(x)
    out = jax.block_until_ready(out)

    assert out.shape == (n, c + 4 * (c // len(pool_sizes)), h, w), out.shape
    ref = _reference(x, module)
    np.testing.assert_allclose(np.asarray(out), ref, rtol=1e-4, atol=1e-4)

    print("KERNEL_OK")
</pallas_src>

<mosaic_0001>
module attributes {stable_mosaic.version = 11 : i64} {
  func.func @kernel(%arg0: i32, %arg1: memref<1x8x256xf32, #tpu.memory_space<vmem>>, %arg2: memref<256x50xf32, #tpu.memory_space<vmem>>, %arg3: memref<4x2x8xf32, #tpu.memory_space<vmem>>, %arg4: memref<4x2x36xf32, #tpu.memory_space<vmem>>, %arg5: memref<36x256xf32, #tpu.memory_space<vmem>>, %arg6: memref<9x256xf32, #tpu.memory_space<vmem>>, %arg7: memref<4x256xf32, #tpu.memory_space<vmem>>, %arg8: memref<1x256xf32, #tpu.memory_space<vmem>>, %arg9: memref<1x16x256xf32, #tpu.memory_space<vmem>>) attributes {dimension_semantics = [#tpu.dimension_semantics<parallel>], iteration_bounds = array<i64: 2>, scalar_prefetch = 0 : i64, scratch_operands = 0 : i64, tpu.core_type = #tpu.core_type<tc>, window_params = [{transform_indices = @transform_0, window_bounds = array<i64: 1, 8, 256>}, {pipeline_mode = #tpu.pipeline_mode<synchronous>, transform_indices = @transform_1, window_bounds = array<i64: 256, 50>}, {pipeline_mode = #tpu.pipeline_mode<synchronous>, transform_indices = @transform_2, window_bounds = array<i64: 4, 2, 8>}, {pipeline_mode = #tpu.pipeline_mode<synchronous>, transform_indices = @transform_3, window_bounds = array<i64: 4, 2, 36>}, {pipeline_mode = #tpu.pipeline_mode<synchronous>, transform_indices = @transform_4, window_bounds = array<i64: 36, 256>}, {pipeline_mode = #tpu.pipeline_mode<synchronous>, transform_indices = @transform_5, window_bounds = array<i64: 9, 256>}, {pipeline_mode = #tpu.pipeline_mode<synchronous>, transform_indices = @transform_6, window_bounds = array<i64: 4, 256>}, {pipeline_mode = #tpu.pipeline_mode<synchronous>, transform_indices = @transform_7, window_bounds = array<i64: 1, 256>}, {transform_indices = @transform_8, window_bounds = array<i64: 1, 16, 256>}]} {
    %c0 = arith.constant 0 : index
    %c0_0 = arith.constant 0 : index
    %c0_1 = arith.constant 0 : index
    %0 = vector.load %arg1[%c0, %c0_0, %c0_1] : memref<1x8x256xf32, #tpu.memory_space<vmem>>, vector<1x8x256xf32>
    %1 = vector.shape_cast %0 : vector<1x8x256xf32> to vector<8x256xf32>
    %c0_2 = arith.constant 0 : index
    %c0_3 = arith.constant 0 : index
    %c0_4 = arith.constant 0 : index
    %2 = vector.load %arg9[%c0_2, %c0_3, %c0_4] : memref<1x16x256xf32, #tpu.memory_space<vmem>>, vector<1x8x256xf32>
    %3 = vector.shape_cast %2 : vector<1x8x256xf32> to vector<8x256xf32>
    %4 = vector.shape_cast %1 : vector<8x256xf32> to vector<1x8x256xf32>
    tpu.vector_store %arg9[%c0_2, %c0_3, %c0_4], %4 {strides = array<i32>} : memref<1x16x256xf32, #tpu.memory_space<vmem>>, vector<1x8x256xf32>,
    %c0_5 = arith.constant 0 : index
    %c0_6 = arith.constant 0 : index
    %5 = vector.load %arg2[%c0_5, %c0_6] : memref<256x50xf32, #tpu.memory_space<vmem>>, vector<256x50xf32>
    %cst = arith.constant dense<0.000000e+00> : vector<8x50xf32>
    %6 = tpu.matmul %1, %5, %cst {dimension_numbers = #tpu.dot_dimension_numbers<[1], [0], [0], [1], [0, 0, 1, 1], [], []>} : vector<8x256xf32>, vector<256x50xf32>, vector<8x50xf32> -> vector<8x50xf32>
    %7 = vector.extract_strided_slice %6 {offsets = [0, 0], sizes = [8, 36], strides = [1, 1]} : vector<8x50xf32> to vector<8x36xf32>
    %c0_7 = arith.constant 0 : index
    %c0_8 = arith.constant 0 : index
    %c0_9 = arith.constant 0 : index
    %8 = vector.load %arg3[%c0_7, %c0_8, %c0_9] : memref<4x2x8xf32, #tpu.memory_space<vmem>>, vector<1x2x8xf32>
    %9 = vector.shape_cast %8 : vector<1x2x8xf32> to vector<2x8xf32>
    %cst_10 = arith.constant dense<0.000000e+00> : vector<2x36xf32>
    %10 = tpu.matmul %9, %7, %cst_10 {dimension_numbers = #tpu.dot_dimension_numbers<[1], [0], [0], [1], [0, 0, 1, 1], [], []>} : vector<2x8xf32>, vector<8x36xf32>, vector<2x36xf32> -> vector<2x36xf32>
    %c0_11 = arith.constant 0 : index
    %c0_12 = arith.constant 0 : index
    %c0_13 = arith.constant 0 : index
    %11 = vector.load %arg4[%c0_11, %c0_12, %c0_13] : memref<4x2x36xf32, #tpu.memory_space<vmem>>, vector<1x2x36xf32>
    %12 = vector.shape_cast %11 : vector<1x2x36xf32> to vector<2x36xf32>
    %13 = arith.addf %10, %12 : vector<2x36xf32>
    %cst_14 = arith.constant 0.000000e+00 : f32
    %14 = vector.broadcast %cst_14 : f32 to vector<2x36xf32>
    %15 = arith.maximumf %13, %14 : vector<2x36xf32>
    %c0_15 = arith.constant 0 : index
    %c0_16 = arith.constant 0 : index
    %16 = vector.load %arg5[%c0_15, %c0_16] : memref<36x256xf32, #tpu.memory_space<vmem>>, vector<36x256xf32>
    %cst_17 = arith.constant dense<0.000000e+00> : vector<2x256xf32>
    %17 = tpu.matmul %15, %16, %cst_17 {dimension_numbers = #tpu.dot_dimension_numbers<[1], [0], [0], [1], [0, 0, 1, 1], [], []>} : vector<2x36xf32>, vector<36x256xf32>, vector<2x256xf32> -> vector<2x256xf32>
    %c0_18 = arith.constant 0 : index
    %c8 = arith.constant 8 : index
    %c0_19 = arith.constant 0 : index
    %18 = vector.load %arg9[%c0_18, %c8, %c0_19] : memref<1x16x256xf32, #tpu.memory_space<vmem>>, vector<1x2x256xf32>
    %19 = vector.shape_cast %18 : vector<1x2x256xf32> to vector<2x256xf32>
    %20 = vector.shape_cast %17 : vector<2x256xf32> to vector<1x2x256xf32>
    tpu.vector_store %arg9[%c0_18, %c8, %c0_19], %20 {strides = array<i32>} : memref<1x16x256xf32, #tpu.memory_space<vmem>>, vector<1x2x256xf32>,
    %21 = vector.extract_strided_slice %6 {offsets = [0, 36], sizes = [8, 9], strides = [1, 1]} : vector<8x50xf32> to vector<8x9xf32>
    %c1 = arith.constant 1 : index
    %c0_20 = arith.constant 0 : index
    %c0_21 = arith.constant 0 : index
    %22 = vector.load %arg3[%c1, %c0_20, %c0_21] : memref<4x2x8xf32, #tpu.memory_space<vmem>>, vector<1x2x8xf32>
    %23 = vector.shape_cast %22 : vector<1x2x8xf32> to vector<2x8xf32>
    %cst_22 = arith.constant dense<0.000000e+00> : vector<2x9xf32>
    %24 = tpu.matmul %23, %21, %cst_22 {dimension_numbers = #tpu.dot_dimension_numbers<[1], [0], [0], [1], [0, 0, 1, 1], [], []>} : vector<2x8xf32>, vector<8x9xf32>, vector<2x9xf32> -> vector<2x9xf32>
    %c1_23 = arith.constant 1 : index
    %c0_24 = arith.constant 0 : index
    %c0_25 = arith.constant 0 : index
    %25 = vector.load %arg4[%c1_23, %c0_24, %c0_25] : memref<4x2x36xf32, #tpu.memory_space<vmem>>, vector<1x2x36xf32>
    %26 = vector.shape_cast %25 : vector<1x2x36xf32> to vector<2x36xf32>
    %27 = vector.extract_strided_slice %26 {offsets = [0, 0], sizes = [2, 9], strides = [1, 1]} : vector<2x36xf32> to vector<2x9xf32>
    %28 = arith.addf %24, %27 : vector<2x9xf32>
    %cst_26 = arith.constant 0.000000e+00 : f32
    %29 = vector.broadcast %cst_26 : f32 to vector<2x9xf32>
    %30 = arith.maximumf %28, %29 : vector<2x9xf32>
    %c0_27 = arith.constant 0 : index
    %c0_28 = arith.constant 0 : index
    %31 = vector.load %arg6[%c0_27, %c0_28] : memref<9x256xf32, #tpu.memory_space<vmem>>, vector<9x256xf32>
    %cst_29 = arith.constant dense<0.000000e+00> : vector<2x256xf32>
    %32 = tpu.matmul %30, %31, %cst_29 {dimension_numbers = #tpu.dot_dimension_numbers<[1], [0], [0], [1], [0, 0, 1, 1], [], []>} : vector<2x9xf32>, vector<9x256xf32>, vector<2x256xf32> -> vector<2x256xf32>
    %c0_30 = arith.constant 0 : index
    %c10 = arith.constant 10 : index
    %c0_31 = arith.constant 0 : index
    %33 = vector.load %arg9[%c0_30, %c10, %c0_31] : memref<1x16x256xf32, #tpu.memory_space<vmem>>, vector<1x2x256xf32>
    %34 = vector.shape_cast %33 : vector<1x2x256xf32> to vector<2x256xf32>
    %35 = vector.shape_cast %32 : vector<2x256xf32> to vector<1x2x256xf32>
    tpu.vector_store %arg9[%c0_30, %c10, %c0_31], %35 {strides = array<i32>} : memref<1x16x256xf32, #tpu.memory_space<vmem>>, vector<1x2x256xf32>,
    %36 = vector.extract_strided_slice %6 {offsets = [0, 45], sizes = [8, 4], strides = [1, 1]} : vector<8x50xf32> to vector<8x4xf32>
    %c2 = arith.constant 2 : index
    %c0_32 = arith.constant 0 : index
    %c0_33 = arith.constant 0 : index
    %37 = vector.load %arg3[%c2, %c0_32, %c0_33] : memref<4x2x8xf32, #tpu.memory_space<vmem>>, vector<1x2x8xf32>
    %38 = vector.shape_cast %37 : vector<1x2x8xf32> to vector<2x8xf32>
    %cst_34 = arith.constant dense<0.000000e+00> : vector<2x4xf32>
    %39 = tpu.matmul %38, %36, %cst_34 {dimension_numbers = #tpu.dot_dimension_numbers<[1], [0], [0], [1], [0, 0, 1, 1], [], []>} : vector<2x8xf32>, vector<8x4xf32>, vector<2x4xf32> -> vector<2x4xf32>
    %c2_35 = arith.constant 2 : index
    %c0_36 = arith.constant 0 : index
    %c0_37 = arith.constant 0 : index
    %40 = vector.load %arg4[%c2_35, %c0_36, %c0_37] : memref<4x2x36xf32, #tpu.memory_space<vmem>>, vector<1x2x36xf32>
    %41 = vector.shape_cast %40 : vector<1x2x36xf32> to vector<2x36xf32>
    %42 = vector.extract_strided_slice %41 {offsets = [0, 0], sizes = [2, 4], strides = [1, 1]} : vector<2x36xf32> to vector<2x4xf32>
    %43 = arith.addf %39, %42 : vector<2x4xf32>
    %cst_38 = arith.constant 0.000000e+00 : f32
    %44 = vector.broadcast %cst_38 : f32 to vector<2x4xf32>
    %45 = arith.maximumf %43, %44 : vector<2x4xf32>
    %c0_39 = arith.constant 0 : index
    %c0_40 = arith.constant 0 : index
    %46 = vector.load %arg7[%c0_39, %c0_40] : memref<4x256xf32, #tpu.memory_space<vmem>>, vector<4x256xf32>
    %cst_41 = arith.constant dense<0.000000e+00> : vector<2x256xf32>
    %47 = tpu.matmul %45, %46, %cst_41 {dimension_numbers = #tpu.dot_dimension_numbers<[1], [0], [0], [1], [0, 0, 1, 1], [], []>} : vector<2x4xf32>, vector<4x256xf32>, vector<2x256xf32> -> vector<2x256xf32>
    %c0_42 = arith.constant 0 : index
    %c12 = arith.constant 12 : index
    %c0_43 = arith.constant 0 : index
    %48 = vector.load %arg9[%c0_42, %c12, %c0_43] : memref<1x16x256xf32, #tpu.memory_space<vmem>>, vector<1x2x256xf32>
    %49 = vector.shape_cast %48 : vector<1x2x256xf32> to vector<2x256xf32>
    %50 = vector.shape_cast %47 : vector<2x256xf32> to vector<1x2x256xf32>
    tpu.vector_store %arg9[%c0_42, %c12, %c0_43], %50 {strides = array<i32>} : memref<1x16x256xf32, #tpu.memory_space<vmem>>, vector<1x2x256xf32>,
    %51 = vector.extract_strided_slice %6 {offsets = [0, 49], sizes = [8, 1], strides = [1, 1]} : vector<8x50xf32> to vector<8x1xf32>
    %c3 = arith.constant 3 : index
    %c0_44 = arith.constant 0 : index
    %c0_45 = arith.constant 0 : index
    %52 = vector.load %arg3[%c3, %c0_44, %c0_45] : memref<4x2x8xf32, #tpu.memory_space<vmem>>, vector<1x2x8xf32>
    %53 = vector.shape_cast %52 : vector<1x2x8xf32> to vector<2x8xf32>
    %cst_46 = arith.constant dense<0.000000e+00> : vector<2x1xf32>
    %54 = tpu.matmul %53, %51, %cst_46 {dimension_numbers = #tpu.dot_dimension_numbers<[1], [0], [0], [1], [0, 0, 1, 1], [], []>} : vector<2x8xf32>, vector<8x1xf32>, vector<2x1xf32> -> vector<2x1xf32>
    %c3_47 = arith.constant 3 : index
    %c0_48 = arith.constant 0 : index
    %c0_49 = arith.constant 0 : index
    %55 = vector.load %arg4[%c3_47, %c0_48, %c0_49] : memref<4x2x36xf32, #tpu.memory_space<vmem>>, vector<1x2x36xf32>
    %56 = vector.shape_cast %55 : vector<1x2x36xf32> to vector<2x36xf32>
    %57 = vector.extract_strided_slice %56 {offsets = [0, 0], sizes = [2, 1], strides = [1, 1]} : vector<2x36xf32> to vector<2x1xf32>
    %58 = arith.addf %54, %57 : vector<2x1xf32>
    %cst_50 = arith.constant 0.000000e+00 : f32
    %59 = vector.broadcast %cst_50 : f32 to vector<2x1xf32>
    %60 = arith.maximumf %58, %59 : vector<2x1xf32>
    %c0_51 = arith.constant 0 : index
    %c0_52 = arith.constant 0 : index
    %61 = vector.load %arg8[%c0_51, %c0_52] : memref<1x256xf32, #tpu.memory_space<vmem>>, vector<1x256xf32>
    %cst_53 = arith.constant dense<0.000000e+00> : vector<2x256xf32>
    %62 = tpu.matmul %60, %61, %cst_53 {dimension_numbers = #tpu.dot_dimension_numbers<[1], [0], [0], [1], [0, 0, 1, 1], [], []>} : vector<2x1xf32>, vector<1x256xf32>, vector<2x256xf32> -> vector<2x256xf32>
    %c0_54 = arith.constant 0 : index
    %c14 = arith.constant 14 : index
    %c0_55 = arith.constant 0 : index
    %63 = vector.load %arg9[%c0_54, %c14, %c0_55] : memref<1x16x256xf32, #tpu.memory_space<vmem>>, vector<1x2x256xf32>
    %64 = vector.shape_cast %63 : vector<1x2x256xf32> to vector<2x256xf32>
    %65 = vector.shape_cast %62 : vector<2x256xf32> to vector<1x2x256xf32>
    tpu.vector_store %arg9[%c0_54, %c14, %c0_55], %65 {strides = array<i32>} : memref<1x16x256xf32, #tpu.memory_space<vmem>>, vector<1x2x256xf32>,
    return
  }
  func.func @transform_0(%arg0: i32) -> (i32, i32, i32) {
    %c0_i32 = arith.constant 0 : i32
    %c0_i32_0 = arith.constant 0 : i32
    %c0_i32_1 = arith.constant 0 : i32
    return %arg0, %c0_i32, %c0_i32_0 : i32, i32, i32
  }
  func.func @transform_1(%arg0: i32) -> (i32, i32) {
    %c0_i32 = arith.constant 0 : i32
    %c0_i32_0 = arith.constant 0 : i32
    %c0_i32_1 = arith.constant 0 : i32
    return %c0_i32, %c0_i32_0 : i32, i32
  }
  func.func @transform_2(%arg0: i32) -> (i32, i32, i32) {
    %c0_i32 = arith.constant 0 : i32
    %c0_i32_0 = arith.constant 0 : i32
    %c0_i32_1 = arith.constant 0 : i32
    %c0_i32_2 = arith.constant 0 : i32
    return %c0_i32, %c0_i32_0, %c0_i32_1 : i32, i32, i32
  }
  func.func @transform_3(%arg0: i32) -> (i32, i32, i32) {
    %c0_i32 = arith.constant 0 : i32
    %c0_i32_0 = arith.constant 0 : i32
    %c0_i32_1 = arith.constant 0 : i32
    %c0_i32_2 = arith.constant 0 : i32
    return %c0_i32, %c0_i32_0, %c0_i32_1 : i32, i32, i32
  }
  func.func @transform_4(%arg0: i32) -> (i32, i32) {
    %c0_i32 = arith.constant 0 : i32
    %c0_i32_0 = arith.constant 0 : i32
    %c0_i32_1 = arith.constant 0 : i32
    return %c0_i32, %c0_i32_0 : i32, i32
  }
  func.func @transform_5(%arg0: i32) -> (i32, i32) {
    %c0_i32 = arith.constant 0 : i32
    %c0_i32_0 = arith.constant 0 : i32
    %c0_i32_1 = arith.constant 0 : i32
    return %c0_i32, %c0_i32_0 : i32, i32
  }
  func.func @transform_6(%arg0: i32) -> (i32, i32) {
    %c0_i32 = arith.constant 0 : i32
    %c0_i32_0 = arith.constant 0 : i32
    %c0_i32_1 = arith.constant 0 : i32
    return %c0_i32, %c0_i32_0 : i32, i32
  }
  func.func @transform_7(%arg0: i32) -> (i32, i32) {
    %c0_i32 = arith.constant 0 : i32
    %c0_i32_0 = arith.constant 0 : i32
    %c0_i32_1 = arith.constant 0 : i32
    return %c0_i32, %c0_i32_0 : i32, i32
  }
  func.func @transform_8(%arg0: i32) -> (i32, i32, i32) {
    %c0_i32 = arith.constant 0 : i32
    %c0_i32_0 = arith.constant 0 : i32
    %c0_i32_1 = arith.constant 0 : i32
    return %arg0, %c0_i32, %c0_i32_0 : i32, i32, i32
  }
}

</mosaic_0001>

<llo_original>
// kernel: forward.1
$region0: #{forward.1}
  #allocation0 [shape = 'u32[]', space=smem, size = 0x4, offset = 0x4, fixed_abs, tag = 'smem constant byte address 0x4 - core index']
  #allocation1 [shape = 'u32[144,128]{1,0:T(1,128)}', space=vmem, size = 0x12000, scoped, tag = 'internal scratch']
  %s0 = inlined_call_operand.hbm [shape: f32[2,8,256], index: 0, kind: input, shape index: {}]
  %s1 = inlined_call_operand.hbm [shape: f32[256,50], index: 1, kind: input, shape index: {}]
  %s2 = inlined_call_operand.hbm [shape: f32[4,2,8], index: 2, kind: input, shape index: {}]
  %s3 = inlined_call_operand.hbm [shape: f32[4,2,36], index: 3, kind: input, shape index: {}]
  %s4 = inlined_call_operand.hbm [shape: f32[36,256], index: 4, kind: input, shape index: {}]
  %s5 = inlined_call_operand.hbm [shape: f32[9,256], index: 5, kind: input, shape index: {}]
  %s6 = inlined_call_operand.vmem [shape: f32[4,256], index: 6, kind: input, shape index: {}]
  %s7 = inlined_call_operand.vmem [shape: f32[1,256], index: 7, kind: input, shape index: {}]
  %s8 = inlined_call_operand.hbm [shape: f32[2,16,256], index: 8, kind: output, shape index: {}]
  %s9 = sld [smem:[#allocation0]]
  $region89: #{forward.1} parent=0
    _
  %s11 = ssub.s32 1, %s9
  %s12 = scalar_select 0, %s11, %s9
  $region1: #{forward.1} parent=0
    #allocation2 [shape = 'u8[16384]{0}', space=vmem, size = 0x4000, scoped, tag = 'input window, operand 0']
    #allocation3 [shape = 's32[2]{0}', space=sflag, size = 0x8, scoped, tag = 'scoped memory for forward.1']
    #allocation4 [shape = 's32[2]{0}', space=sflag, size = 0x8, scoped, tag = 'scoped memory for forward.1']
    #allocation5 [shape = 'u8[131072]{0}', space=vmem, size = 0x20000, scoped, tag = 'input window, operand 1, single buffered']
    #allocation6 [shape = 's32[1]{0}', space=sflag, size = 0x4, scoped, tag = 'scoped memory for forward.1']
    #allocation7 [shape = 'u8[4096]{0}', space=vmem, size = 0x1000, scoped, tag = 'input window, operand 2, single buffered']
    #allocation8 [shape = 'u8[4096]{0}', space=vmem, size = 0x1000, scoped, tag = 'input window, operand 3, single buffered']
    #allocation9 [shape = 's32[1]{0}', space=sflag, size = 0x4, scoped, tag = 'scoped memory for forward.1']
    #allocation10 [shape = 'u8[40960]{0}', space=vmem, size = 0xa000, scoped, tag = 'input window, operand 4, single buffered']
    #allocation11 [shape = 'u8[16384]{0}', space=vmem, size = 0x4000, scoped, tag = 'input window, operand 5, single buffered']
    #allocation12 [shape = 's32[1]{0}', space=sflag, size = 0x4, scoped, tag = 'scoped memory for forward.1']
    #allocation13 [shape = 'u8[32768]{0}', space=vmem, size = 0x8000, scoped, tag = 'output window, operand 0']
    %13 = vsyncpa [#allocation3], 0
    %s14 = scalar_lea.sflag [#allocation3], 1
    %15 = vsyncpa %s14, 0
    %16 = vsyncpa [#allocation6], 0
    %17 = vsyncpa [#allocation9], 0
    %18 = vsyncpa [#allocation12], 0
    %19 = vsyncpa [#allocation4], 0
    %s20 = scalar_lea.sflag [#allocation4], 1
    %21 = vsyncpa %s20, 0
    loop: start=0, step=1, limit=4
    $region2: #{forward.1} parent=1 // loop_pre_header
      _
    $region3: #{forward.1} parent=1 // loop_header
      %s23 = sphi 0, %s27
      %p24 = scmp.ge.s32.totalorder %s23, 4
      %s33 = sphi 0, %s35
      %s36 = sphi 0, %s33
      %s37 = sphi 0, %s36
      %s53 = sphi 0, %s37
      %s57 = sphi 0, %s57
      %s59 = sphi 0, %s57
      %s60 = sphi 0, %s59
      %s74 = sphi 0, %s60
      %s78 = sphi 0, %s78
      %s80 = sphi 0, %s78
      %s81 = sphi 0, %s80
      %s95 = sphi 0, %s81
      %s99 = sphi 0, %s99
      %s101 = sphi 0, %s99
      %s102 = sphi 0, %s101
      %s116 = sphi 0, %s102
      %s120 = sphi 0, %s120
      %s122 = sphi 0, %s120
      %s123 = sphi 0, %s122
      %s137 = sphi 0, %s123
      %s141 = sphi 0, %s141
      %s143 = sphi 0, %s141
      %s144 = sphi 0, %s143
      %s158 = sphi 0, %s144
      %s162 = sphi 0, %s162
      %s164 = sphi 0, %s162
      %s165 = sphi 0, %s164
      %s179 = sphi 0, %s165
      %s183 = sphi 0, %s183
      %s185 = sphi 0, %s183
      %s186 = sphi 0, %s185
      %s200 = sphi 0, %s186
      %s206 = sphi 0, %s208
      %s209 = sphi 0, %s206
      %s210 = sphi 0, %s209
      %s226 = sphi 0, %s210
    $region4: #{forward.1} parent=1 // loop_header_branch
      %26 = sbr.rel (%p24) target = $region8
    $region5: #{forward.1} parent=1 // loop_body
      %s28 = ssub.s32 %s23, 1
      %s29 = ssub.s32 %s23, 2
      %s30 = sadd.s32 %s23, 1
      %s31 = ssub.s32 %s23, %s30
      %p32 = scmp.eq.s32.totalorder %s31, 0
      %s34 = sadd.s32 %s33, 1
      %s35 = scalar_select %p32, %s33, %s34
      %p38 = pneg %p32
      %p39 = scmp.eq.s32.totalorder %s23, 1
      %p40 = por %p38, %p39
      %p41 = scmp.ne.s32.totalorder %s33, %s36
      %p42 = scmp.eq.s32.totalorder %s23, 0
      %p43 = por %p41, %p42
      %p44 = scmp.ne.s32.totalorder %s33, %s36
      %p45 = scmp.eq.s32.totalorder %s28, 1
      %p46 = por %p44, %p45
      %p47 = scmp.ne.s32.totalorder %s36, %s37
      %p48 = scmp.eq.s32.totalorder %s28, 0
      %p49 = por %p47, %p48
      %p50 = scmp.ne.s32.totalorder %s36, %s37
      %p51 = scmp.eq.s32.totalorder %s29, 1
      %p52 = por %p50, %p51
      %p54 = scmp.ne.s32.totalorder %s37, %s53
      %p55 = scmp.eq.s32.totalorder %s29, 0
      %p56 = por %p54, %p55
      %s58 = sadd.s32 %s57, 1
      %p61 = scmp.eq.s32.totalorder %s23, 1
      %p62 = scmp.ne.s32.totalorder %s57, %s59
      %p63 = scmp.eq.s32.totalorder %s23, 0
      %p64 = por %p62, %p63
      %p65 = scmp.ne.s32.totalorder %s57, %s59
      %p66 = scmp.eq.s32.totalorder %s28, 1
      %p67 = por %p65, %p66
      %p68 = scmp.ne.s32.totalorder %s59, %s60
      %p69 = scmp.eq.s32.totalorder %s28, 0
      %p70 = por %p68, %p69
      %p71 = scmp.ne.s32.totalorder %s59, %s60
      %p72 = scmp.eq.s32.totalorder %s29, 1
      %p73 = por %p71, %p72
      %p75 = scmp.ne.s32.totalorder %s60, %s74
      %p76 = scmp.eq.s32.totalorder %s29, 0
      %p77 = por %p75, %p76
      %s79 = sadd.s32 %s78, 1
      %p82 = scmp.eq.s32.totalorder %s23, 1
      %p83 = scmp.ne.s32.totalorder %s78, %s80
      %p84 = scmp.eq.s32.totalorder %s23, 0
      %p85 = por %p83, %p84
      %p86 = scmp.ne.s32.totalorder %s78, %s80
      %p87 = scmp.eq.s32.totalorder %s28, 1
      %p88 = por %p86, %p87
      %p89 = scmp.ne.s32.totalorder %s80, %s81
      %p90 = scmp.eq.s32.totalorder %s28, 0
      %p91 = por %p89, %p90
      %p92 = scmp.ne.s32.totalorder %s80, %s81
      %p93 = scmp.eq.s32.totalorder %s29, 1
      %p94 = por %p92, %p93
      %p96 = scmp.ne.s32.totalorder %s81, %s95
      %p97 = scmp.eq.s32.totalorder %s29, 0
      %p98 = por %p96, %p97
      %s100 = sadd.s32 %s99, 1
      %p103 = scmp.eq.s32.totalorder %s23, 1
      %p104 = scmp.ne.s32.totalorder %s99, %s101
      %p105 = scmp.eq.s32.totalorder %s23, 0
      %p106 = por %p104, %p105
      %p107 = scmp.ne.s32.totalorder %s99, %s101
      %p108 = scmp.eq.s32.totalorder %s28, 1
      %p109 = por %p107, %p108
      %p110 = scmp.ne.s32.totalorder %s101, %s102
      %p111 = scmp.eq.s32.totalorder %s28, 0
      %p112 = por %p110, %p111
      %p113 = scmp.ne.s32.totalorder %s101, %s102
      %p114 = scmp.eq.s32.totalorder %s29, 1
      %p115 = por %p113, %p114
      %p117 = scmp.ne.s32.totalorder %s102, %s116
      %p118 = scmp.eq.s32.totalorder %s29, 0
      %p119 = por %p117, %p118
      %s121 = sadd.s32 %s120, 1
      %p124 = scmp.eq.s32.totalorder %s23, 1
      %p125 = scmp.ne.s32.totalorder %s120, %s122
      %p126 = scmp.eq.s32.totalorder %s23, 0
      %p127 = por %p125, %p126
      %p128 = scmp.ne.s32.totalorder %s120, %s122
      %p129 = scmp.eq.s32.totalorder %s28, 1
      %p130 = por %p128, %p129
      %p131 = scmp.ne.s32.totalorder %s122, %s123
      %p132 = scmp.eq.s32.totalorder %s28, 0
      %p133 = por %p131, %p132
      %p134 = scmp.ne.s32.totalorder %s122, %s123
      %p135 = scmp.eq.s32.totalorder %s29, 1
      %p136 = por %p134, %p135
      %p138 = scmp.ne.s32.totalorder %s123, %s137
      %p139 = scmp.eq.s32.totalorder %s29, 0
      %p140 = por %p138, %p139
      %s142 = sadd.s32 %s141, 1
      %p145 = scmp.eq.s32.totalorder %s23, 1
      %p146 = scmp.ne.s32.totalorder %s141, %s143
      %p147 = scmp.eq.s32.totalorder %s23, 0
      %p148 = por %p146, %p147
      %p149 = scmp.ne.s32.totalorder %s141, %s143
      %p150 = scmp.eq.s32.totalorder %s28, 1
      %p151 = por %p149, %p150
      %p152 = scmp.ne.s32.totalorder %s143, %s144
      %p153 = scmp.eq.s32.totalorder %s28, 0
      %p154 = por %p152, %p153
      %p155 = scmp.ne.s32.totalorder %s143, %s144
      %p156 = scmp.eq.s32.totalorder %s29, 1
      %p157 = por %p155, %p156
      %p159 = scmp.ne.s32.totalorder %s144, %s158
      %p160 = scmp.eq.s32.totalorder %s29, 0
      %p161 = por %p159, %p160
      %s163 = sadd.s32 %s162, 1
      %p166 = scmp.eq.s32.totalorder %s23, 1
      %p167 = scmp.ne.s32.totalorder %s162, %s164
      %p168 = scmp.eq.s32.totalorder %s23, 0
      %p169 = por %p167, %p168
      %p170 = scmp.ne.s32.totalorder %s162, %s164
      %p171 = scmp.eq.s32.totalorder %s28, 1
      %p172 = por %p170, %p171
      %p173 = scmp.ne.s32.totalorder %s164, %s165
      %p174 = scmp.eq.s32.totalorder %s28, 0
      %p175 = por %p173, %p174
      %p176 = scmp.ne.s32.totalorder %s164, %s165
      %p177 = scmp.eq.s32.totalorder %s29, 1
      %p178 = por %p176, %p177
      %p180 = scmp.ne.s32.totalorder %s165, %s179
      %p181 = scmp.eq.s32.totalorder %s29, 0
      %p182 = por %p180, %p181
      %s184 = sadd.s32 %s183, 1
      %p187 = scmp.eq.s32.totalorder %s23, 1
      %p188 = scmp.ne.s32.totalorder %s183, %s185
      %p189 = scmp.eq.s32.totalorder %s23, 0
      %p190 = por %p188, %p189
      %p191 = scmp.ne.s32.totalorder %s183, %s185
      %p192 = scmp.eq.s32.totalorder %s28, 1
      %p193 = por %p191, %p192
      %p194 = scmp.ne.s32.totalorder %s185, %s186
      %p195 = scmp.eq.s32.totalorder %s28, 0
      %p196 = por %p194, %p195
      %p197 = scmp.ne.s32.totalorder %s185, %s186
      %p198 = scmp.eq.s32.totalorder %s29, 1
      %p199 = por %p197, %p198
      %p201 = scmp.ne.s32.totalorder %s186, %s200
      %p202 = scmp.eq.s32.totalorder %s29, 0
      %p203 = por %p201, %p202
      %s204 = ssub.s32 %s23, %s30
      %p205 = scmp.eq.s32.totalorder %s204, 0
      %s207 = sadd.s32 %s206, 1
      %s208 = scalar_select %p205, %s206, %s207
      %p211 = pneg %p205
      %p212 = scmp.eq.s32.totalorder %s23, 1
      %p213 = por %p211, %p212
      %p214 = scmp.ne.s32.totalorder %s206, %s209
      %p215 = scmp.eq.s32.totalorder %s23, 0
      %p216 = por %p214, %p215
      %p217 = scmp.ne.s32.totalorder %s206, %s209
      %p218 = scmp.eq.s32.totalorder %s28, 1
      %p219 = por %p217, %p218
      %p220 = scmp.ne.s32.totalorder %s209, %s210
      %p221 = scmp.eq.s32.totalorder %s28, 0
      %p222 = por %p220, %p221
      %p223 = scmp.ne.s32.totalorder %s209, %s210
      %p224 = scmp.eq.s32.totalorder %s29, 1
      %p225 = por %p223, %p224
      %p227 = scmp.ne.s32.totalorder %s210, %s226
      %p228 = scmp.eq.s32.totalorder %s29, 0
      %p229 = por %p227, %p228
      %p230 = scmp.le.s32.totalorder 1, %s23
      %p231 = scmp.lt.s32.totalorder %s23, 3
      %p232 = pnand %p230, %p231
      %p233 = pneg %p232
      // Predicated region
      $region9: #{forward.1} parent=5 // pred_check
        _
      $region10: #{forward.1} parent=5 // pred_check_branch
        %235 = sbr.rel (%p232) target = $region12
      $region11: #{forward.1} parent=5 // pred_region
        %s236 = ssub.s32 %s23, 1
        // Predicated region
        $region13: #{forward.1} parent=11 // pred_check
          %p237 = pneg %p70
        $region14: #{forward.1} parent=11 // pred_check_branch
          %239 = sbr.rel (%p237) target = $region16
        $region15: #{forward.1} parent=11 // pred_region
          %s241 = ssub.s32 4096, 4096
          %242 = vsyncadd [#allocation6], %s241
          %s243 = sshll.u32 [#allocation5], 4
          %s244 = int_to_ptr.vmem [resolvable:$true] %s243
          %249 = dma.hbm_to_vmem [thread:$0]  %s1, 4096, %s244, [#allocation6], 128, 128, 8
        $region16: #{forward.1} parent=11 // pred_fallthru
          _
        // Predicated region
        $region17: #{forward.1} parent=11 // pred_check
          %p250 = pneg %p91
        $region18: #{forward.1} parent=11 // pred_check_branch
          %252 = sbr.rel (%p250) target = $region20
        $region19: #{forward.1} parent=11 // pred_region
          %s254 = ssub.s32 128, 128
          %255 = vsyncadd [#allocation6], %s254
          %s256 = sshll.u32 [#allocation7], 4
          %s257 = int_to_ptr.vmem [resolvable:$true] %s256
          %262 = dma.hbm_to_vmem [thread:$0]  %s2, 128, %s257, [#allocation6], 32, 32, 2
        $region20: #{forward.1} parent=11 // pred_fallthru
          _
        // Predicated region
        $region21: #{forward.1} parent=11 // pred_check
          %p263 = pneg %p112
        $region22: #{forward.1} parent=11 // pred_check_branch
          %265 = sbr.rel (%p263) target = $region24
        $region23: #{forward.1} parent=11 // pred_region
          %s267 = ssub.s32 128, 128
          %268 = vsyncadd [#allocation9], %s267
          %s269 = sshll.u32 [#allocation8], 4
          %s270 = int_to_ptr.vmem [resolvable:$true] %s269
          %275 = dma.hbm_to_vmem [thread:$0]  %s3, 128, %s270, [#allocation9], 32, 32, 2
        $region24: #{forward.1} parent=11 // pred_fallthru
          _
        // Predicated region
        $region25: #{forward.1} parent=11 // pred_check
          %p276 = pneg %p133
        $region26: #{forward.1} parent=11 // pred_check_branch
          %278 = sbr.rel (%p276) target = $region28
        $region27: #{forward.1} parent=11 // pred_region
          %s280 = ssub.s32 1280, 1280
          %281 = vsyncadd [#allocation9], %s280
          %s282 = sshll.u32 [#allocation10], 4
          %s283 = int_to_ptr.vmem [resolvable:$true] %s282
          %288 = dma.hbm_to_vmem [thread:$0]  %s4, 1280, %s283, [#allocation9], 256, 256, 16
        $region28: #{forward.1} parent=11 // pred_fallthru
          _
        // Predicated region
        $region29: #{forward.1} parent=11 // pred_check
          %p289 = pneg %p154
        $region30: #{forward.1} parent=11 // pred_check_branch
          %291 = sbr.rel (%p289) target = $region32
        $region31: #{forward.1} parent=11 // pred_region
          %s293 = ssub.s32 512, 512
          %294 = vsyncadd [#allocation12], %s293
          %s295 = sshll.u32 [#allocation11], 4
          %s296 = int_to_ptr.vmem [resolvable:$true] %s295
          %301 = dma.hbm_to_vmem [thread:$0]  %s5, 512, %s296, [#allocation12], 256, 256, 16
        $region32: #{forward.1} parent=11 // pred_fallthru
          _
        // Predicated region
        $region33: #{forward.1} parent=11 // pred_check
          %p302 = pneg %p175
        $region34: #{forward.1} parent=11 // pred_check_branch
          %304 = sbr.rel (%p302) target = $region36
        $region35: #{forward.1} parent=11 // pred_region
          _
        $region36: #{forward.1} parent=11 // pred_fallthru
          _
        // Predicated region
        $region37: #{forward.1} parent=11 // pred_check
          %p305 = pneg %p196
        $region38: #{forward.1} parent=11 // pred_check_branch
          %307 = sbr.rel (%p305) target = $region40
        $region39: #{forward.1} parent=11 // pred_region
          _
        $region40: #{forward.1} parent=11 // pred_fallthru
          _
      $region12: #{forward.1} parent=5 // pred_fallthru
        _
      %p308 = scmp.lt.s32.totalorder %s23, 2
      // Predicated region
      $region41: #{forward.1} parent=5 // pred_check
        %p309 = pneg %p308
      $region42: #{forward.1} parent=5 // pred_check_branch
        %311 = sbr.rel (%p309) target = $region44
      $region43: #{forward.1} parent=5 // pred_region
        // Predicated region
        $region45: #{forward.1} parent=43 // pred_check
          %p312 = pneg %p43
        $region46: #{forward.1} parent=43 // pred_check_branch
          %314 = sbr.rel (%p312) target = $region48
        $region47: #{forward.1} parent=43 // pred_region
          %s315 = sand.u32 %s33, 1
          %s316 = scalar_lea.sflag [#allocation3], %s315
          %s317 = sand.u32 %s33, 1
          %s318 = smul.addr %s317, 16
          %s319 = scalar_lea.vmem [#allocation2], %s318
          %s321 = ssub.s32 256, 256
          %322 = vsyncadd %s316, %s321
          %s323 = smul.addr %s23, 2
          %s324 = smul.addr %s323, 128
          %s325 = scalar_lea.hbm %s0, %s324
          %s327 = sshll.u32 %s319, 4
          %s328 = int_to_ptr.vmem [resolvable:$true] %s327
          %330 = dma.hbm_to_vmem [thread:$0]  %s325, 256, %s328, %s316
        $region48: #{forward.1} parent=43 // pred_fallthru
          _
      $region44: #{forward.1} parent=5 // pred_fallthru
        _
      %p331 = scmp.le.s32.totalorder 1, %s23
      %p332 = scmp.lt.s32.totalorder %s23, 3
      %p333 = pnand %p331, %p332
      %p334 = pneg %p333
      // Predicated region
      $region49: #{forward.1} parent=5 // pred_check
        _
      $region50: #{forward.1} parent=5 // pred_check_branch
        %336 = sbr.rel (%p333) target = $region52
      $region51: #{forward.1} parent=5 // pred_region
        %s337 = ssub.s32 %s23, 1
        %s338 = sand.u32 %s36, 1
        %s339 = scalar_lea.sflag [#allocation3], %s338
        %s340 = sand.u32 %s36, 1
        %s341 = smul.addr %s340, 16
        %s342 = scalar_lea.vmem [#allocation2], %s341
        // Predicated region
        $region53: #{forward.1} parent=51 // pred_check
          %p343 = pneg %p49
        $region54: #{forward.1} parent=51 // pred_check_branch
          %345 = sbr.rel (%p343) target = $region56
        $region55: #{forward.1} parent=51 // pred_region
          %346 = dma.done %s339, 256
        $region56: #{forward.1} parent=51 // pred_fallthru
          _
        // Predicated region
        $region57: #{forward.1} parent=51 // pred_check
          %p347 = pneg %p70
        $region58: #{forward.1} parent=51 // pred_check_branch
          %349 = sbr.rel (%p347) target = $region60
        $region59: #{forward.1} parent=51 // pred_region
          %350 = dma.done [#allocation6], 4096
        $region60: #{forward.1} parent=51 // pred_fallthru
          _
        // Predicated region
        $region61: #{forward.1} parent=51 // pred_check
          %p351 = pneg %p91
        $region62: #{forward.1} parent=51 // pred_check_branch
          %353 = sbr.rel (%p351) target = $region64
        $region63: #{forward.1} parent=51 // pred_region
          %354 = dma.done [#allocation6], 128
        $region64: #{forward.1} parent=51 // pred_fallthru
          _
        // Predicated region
        $region65: #{forward.1} parent=51 // pred_check
          %p355 = pneg %p112
        $region66: #{forward.1} parent=51 // pred_check_branch
          %357 = sbr.rel (%p355) target = $region68
        $region67: #{forward.1} parent=51 // pred_region
          %358 = dma.done [#allocation9], 128
        $region68: #{forward.1} parent=51 // pred_fallthru
          _
        // Predicated region
        $region69: #{forward.1} parent=51 // pred_check
          %p359 = pneg %p133
        $region70: #{forward.1} parent=51 // pred_check_branch
          %361 = sbr.rel (%p359) target = $region72
        $region71: #{forward.1} parent=51 // pred_region
          %362 = dma.done [#allocation9], 1280
        $region72: #{forward.1} parent=51 // pred_fallthru
          _
        // Predicated region
        $region73: #{forward.1} parent=51 // pred_check
          %p363 = pneg %p154
        $region74: #{forward.1} parent=51 // pred_check_branch
          %365 = sbr.rel (%p363) target = $region76
        $region75: #{forward.1} parent=51 // pred_region
          %366 = dma.done [#allocation12], 512
        $region76: #{forward.1} parent=51 // pred_fallthru
          _
        %s367 = sand.u32 %s36, 1
        %s368 = scalar_lea.sflag [#allocation3], %s367
        %s369 = sand.u32 %s36, 1
        %s370 = smul.addr %s369, 16
        %s371 = scalar_lea.vmem [#allocation2], %s370
        %p372 = pneg %p49
        %p373 = pneg %p46
        %p374 = pneg %p70
        %p375 = pneg %p67
        %p376 = pneg %p91
        %p377 = pneg %p88
        %p378 = pneg %p112
        %p379 = pneg %p109
        %p380 = pneg %p133
        %p381 = pneg %p130
        %p382 = pneg %p154
        %p383 = pneg %p151
        %p384 = pneg %p175
        %p385 = pneg %p172
        %p386 = pneg %p196
        %p387 = pneg %p193
        %p388 = pneg %p222
        %p389 = pneg %p219
        %s390 = sand.u32 %s209, 1
        %s391 = scalar_lea.sflag [#allocation4], %s390
        %s392 = sand.u32 %s209, 1
        %s393 = smul.addr %s392, 32
        %s394 = scalar_lea.vmem [#allocation13], %s393
        %v395 = vld [vmem:[%s342] sm:$0xff]
        %v396 = vld [vmem:[%s342 + $0x8] sm:$0xff]
        %397 = vst [vmem:[%s394] sm:$0xff] %v395
        %398 = vst [vmem:[%s394 + $0x8] sm:$0xff] %v396
        %v399 = vld [vmem:[#allocation5] sm:$0xff]
        %v400 = vld [vmem:[#allocation5 + $0x8] sm:$0xff]
        %v401 = vld [vmem:[#allocation5 + $0x10] sm:$0xff]
        %v402 = vld [vmem:[#allocation5 + $0x18] sm:$0xff]
        %v403 = vld [vmem:[#allocation5 + $0x20] sm:$0xff]
        %v404 = vld [vmem:[#allocation5 + $0x28] sm:$0xff]
        %v405 = vld [vmem:[#allocation5 + $0x30] sm:$0xff]
        %v406 = vld [vmem:[#allocation5 + $0x38] sm:$0xff]
        %v407 = vld [vmem:[#allocation5 + $0x40] sm:$0xff]
        %v408 = vld [vmem:[#allocation5 + $0x48] sm:$0xff]
        %v409 = vld [vmem:[#allocation5 + $0x50] sm:$0xff]
        %v410 = vld [vmem:[#allocation5 + $0x58] sm:$0xff]
        %v411 = vld [vmem:[#allocation5 + $0x60] sm:$0xff]
        %v412 = vld [vmem:[#allocation5 + $0x68] sm:$0xff]
        %v413 = vld [vmem:[#allocation5 + $0x70] sm:$0xff]
        %v414 = vld [vmem:[#allocation5 + $0x78] sm:$0xff]
        %v415 = vld [vmem:[#allocation5 + $0x80] sm:$0xff]
        %v416 = vld [vmem:[#allocation5 + $0x88] sm:$0xff]
        %v417 = vld [vmem:[#allocation5 + $0x90] sm:$0xff]
        %v418 = vld [vmem:[#allocation5 + $0x98] sm:$0xff]
        %v419 = vld [vmem:[#allocation5 + $0xa0] sm:$0xff]
        %v420 = vld [vmem:[#allocation5 + $0xa8] sm:$0xff]
        %v421 = vld [vmem:[#allocation5 + $0xb0] sm:$0xff]
        %v422 = vld [vmem:[#allocation5 + $0xb8] sm:$0xff]
        %v423 = vld [vmem:[#allocation5 + $0xc0] sm:$0xff]
        %v424 = vld [vmem:[#allocation5 + $0xc8] sm:$0xff]
        %v425 = vld [vmem:[#allocation5 + $0xd0] sm:$0xff]
        %v426 = vld [vmem:[#allocation5 + $0xd8] sm:$0xff]
        %v427 = vld [vmem:[#allocation5 + $0xe0] sm:$0xff]
        %v428 = vld [vmem:[#allocation5 + $0xe8] sm:$0xff]
        %v429 = vld [vmem:[#allocation5 + $0xf0] sm:$0xff]
        %v430 = vld [vmem:[#allocation5 + $0xf8] sm:$0xff]
        %431 = vmatprep.subr.mxu0 0.0
        %432 = vmatpush1.msra.mxu0 %v414
        %433 = vmatprep.subr.mxu0 0.0
        %434 = vmatpush1.msra.mxu0 %v413
        %435 = vmatprep.subr.mxu0 0.0
        %436 = vmatpush1.msra.mxu0 %v412
        %437 = vmatprep.subr.mxu0 0.0
        %438 = vmatpush1.msra.mxu0 %v411
        %439 = vmatprep.subr.mxu0 0.0
        %440 = vmatpush1.msra.mxu0 %v410
        %441 = vmatprep.subr.mxu0 0.0
        %442 = vmatpush1.msra.mxu0 %v409
        %443 = vmatprep.subr.mxu0 0.0
        %444 = vmatpush1.msra.mxu0 %v408
        %445 = vmatprep.subr.mxu0 0.0
        %446 = vmatpush1.msra.mxu0 %v407
        %447 = vmatprep.subr.mxu0 0.0
        %448 = vmatpush1.msra.mxu0 %v406
        %449 = vmatprep.subr.mxu0 0.0
        %450 = vmatpush1.msra.mxu0 %v405
        %451 = vmatprep.subr.mxu0 0.0
        %452 = vmatpush1.msra.mxu0 %v404
        %453 = vmatprep.subr.mxu0 0.0
        %454 = vmatpush1.msra.mxu0 %v403
        %455 = vmatprep.subr.mxu0 0.0
        %456 = vmatpush1.msra.mxu0 %v402
        %457 = vmatprep.subr.mxu0 0.0
        %458 = vmatpush1.msra.mxu0 %v401
        %459 = vmatprep.subr.mxu0 0.0
        %460 = vmatpush1.msra.mxu0 %v400
        %461 = vmatprep.subr.mxu0 0.0
        %462 = vmatpush1.msra.mxu0 %v399
        %463 = vmatprep.subr.mxu0 0.0
        %464 = vmatpush2.msra.mxu0 %v430
        %465 = vmatprep.subr.mxu0 0.0
        %466 = vmatpush2.msra.mxu0 %v429
        %467 = vmatprep.subr.mxu0 0.0
        %468 = vmatpush2.msra.mxu0 %v428
        %469 = vmatprep.subr.mxu0 0.0
        %470 = vmatpush2.msra.mxu0 %v427
        %471 = vmatprep.subr.mxu0 0.0
        %472 = vmatpush2.msra.mxu0 %v426
        %473 = vmatprep.subr.mxu0 0.0
        %474 = vmatpush2.msra.mxu0 %v425
        %475 = vmatprep.subr.mxu0 0.0
        %476 = vmatpush2.msra.mxu0 %v424
        %477 = vmatprep.subr.mxu0 0.0
        %478 = vmatpush2.msra.mxu0 %v423
        %479 = vmatprep.subr.mxu0 0.0
        %480 = vmatpush2.msra.mxu0 %v422
        %481 = vmatprep.subr.mxu0 0.0
        %482 = vmatpush2.msra.mxu0 %v421
        %483 = vmatprep.subr.mxu0 0.0
        %484 = vmatpush2.msra.mxu0 %v420
        %485 = vmatprep.subr.mxu0 0.0
        %486 = vmatpush2.msra.mxu0 %v419
        %487 = vmatprep.subr.mxu0 0.0
        %488 = vmatpush2.msra.mxu0 %v418
        %489 = vmatprep.subr.mxu0 0.0
        %490 = vmatpush2.msra.mxu0 %v417
        %491 = vmatprep.subr.mxu0 0.0
        %492 = vmatpush2.msra.mxu0 %v416
        %493 = vmatprep.subr.mxu0 0.0
        %494 = vmatpush2.msra.mxu0 %v415
        %495 = vmatprep.mubr.f32.mxu0 %v396
        %496 = vmatmul.mubr.f32.gmra.mxu0 %v395
        %v497 = vpop.f32.mrf.mxu0
        %v498 = vadd.f32 0.0, %v497
        %v499 = vpop.f32.mrf.mxu0
        %500 = vdwg.mxu0
        %v501 = vld [vmem:[#allocation7] sm:$0x3]
        %v502 = vld [vmem:[#allocation8] sm:$0x3]
        %vm503 = vcmask 64512
        %v505 = vsel %vm503, %v501, 0
        %507 = vmatprep.subr.mxu0 0.0
        %508 = vmatpush1.msra.mxu0 0.0
        %509 = vmatprep.subr.mxu0 0.0
        %510 = vmatpush1.msra.mxu0 0.0
        %511 = vmatprep.subr.mxu0 0.0
        %512 = vmatpush1.msra.mxu0 0.0
        %513 = vmatprep.subr.mxu0 0.0
        %514 = vmatpush1.msra.mxu0 0.0
        %515 = vmatprep.subr.mxu0 0.0
        %516 = vmatpush1.msra.mxu0 0.0
        %517 = vmatprep.subr.mxu0 0.0
        %518 = vmatpush1.msra.mxu0 0.0
        %519 = vmatprep.subr.mxu0 0.0
        %520 = vmatpush1.msra.mxu0 0.0
        %521 = vmatprep.subr.mxu0 0.0
        %522 = vmatpush1.msra.mxu0 0.0
        %523 = vmatprep.subr.mxu0 0.0
        %524 = vmatpush1.msra.mxu0 0.0
        %525 = vmatprep.subr.mxu0 0.0
        %526 = vmatpush1.msra.mxu0 0.0
        %527 = vmatprep.subr.mxu0 0.0
        %528 = vmatpush1.msra.mxu0 0.0
        %529 = vmatprep.subr.mxu0 0.0
        %530 = vmatpush1.msra.mxu0 0.0
        %531 = vmatprep.subr.mxu0 0.0
        %532 = vmatpush1.msra.mxu0 0.0
        %533 = vmatprep.subr.mxu0 0.0
        %534 = vmatpush1.msra.mxu0 0.0
        %535 = vmatprep.subr.mxu0 0.0
        %536 = vmatpush1.msra.mxu0 0.0
        %537 = vmatprep.subr.mxu0 0.0
        %538 = vmatpush1.msra.mxu0 %v498
        %539 = vmatprep.subr.mxu0 0.0
        %540 = vmatpush2.msra.mxu0 0.0
        %541 = vmatprep.subr.mxu0 0.0
        %542 = vmatpush2.msra.mxu0 0.0
        %543 = vmatprep.subr.mxu0 0.0
        %544 = vmatpush2.msra.mxu0 0.0
        %545 = vmatprep.subr.mxu0 0.0
        %546 = vmatpush2.msra.mxu0 0.0
        %547 = vmatprep.subr.mxu0 0.0
        %548 = vmatpush2.msra.mxu0 0.0
        %549 = vmatprep.subr.mxu0 0.0
        %550 = vmatpush2.msra.mxu0 0.0
        %551 = vmatprep.subr.mxu0 0.0
        %552 = vmatpush2.msra.mxu0 0.0
        %553 = vmatprep.subr.mxu0 0.0
        %554 = vmatpush2.msra.mxu0 0.0
        %555 = vmatprep.subr.mxu0 0.0
        %556 = vmatpush2.msra.mxu0 0.0
        %557 = vmatprep.subr.mxu0 0.0
        %558 = vmatpush2.msra.mxu0 0.0
        %559 = vmatprep.subr.mxu0 0.0
        %560 = vmatpush2.msra.mxu0 0.0
        %561 = vmatprep.subr.mxu0 0.0
        %562 = vmatpush2.msra.mxu0 0.0
        %563 = vmatprep.subr.mxu0 0.0
        %564 = vmatpush2.msra.mxu0 0.0
        %565 = vmatprep.subr.mxu0 0.0
        %566 = vmatpush2.msra.mxu0 0.0
        %567 = vmatprep.subr.mxu0 0.0
        %568 = vmatpush2.msra.mxu0 0.0
        %569 = vmatprep.subr.mxu0 0.0
        %570 = vmatpush2.msra.mxu0 0.0
        %571 = vmatprep.mubr.f32.mxu0 0.0
        %572 = vmatmul.mubr.f32.gmra.mxu0 %v505
        %v573 = vpop.f32.mrf.mxu0
        %v574 = vadd.f32 %v502, %v573
        %v575 = vpop.f32.mrf.mxu0
        %576 = vdwg.mxu0
        %v577 = vmax.f32 %v574, 0.0
        %v578 = vld [vmem:[#allocation10] sm:$0xff]
        %v579 = vld [vmem:[#allocation10 + $0x8] sm:$0xff]
        %v580 = vld [vmem:[#allocation10 + $0x10] sm:$0xff]
        %v581 = vld [vmem:[#allocation10 + $0x18] sm:$0xff]
        %v582 = vld [vmem:[#allocation10 + $0x20] sm:$0xff]
        %v583 = vld [vmem:[#allocation10 + $0x28] sm:$0xff]
        %v584 = vld [vmem:[#allocation10 + $0x30] sm:$0xff]
        %v585 = vld [vmem:[#allocation10 + $0x38] sm:$0xff]
        %v586 = vld [vmem:[#allocation10 + $0x40] sm:$0xf]
        %v587 = vld [vmem:[#allocation10 + $0x48] sm:$0xf]
        %vm588 = vcmask 293888
        %v590 = vsel %vm588, %v577, 0
        %vm592 = vcmask 1043456
        %v594 = vsel %vm592, %v586, 0
        %v597 = vsel %vm592, %v587, 0
        %599 = vmatprep.subr.mxu0 0.0
        %600 = vmatpush1.msra.mxu0 0.0
        %601 = vmatprep.subr.mxu0 0.0
        %602 = vmatpush1.msra.mxu0 0.0
        %603 = vmatprep.subr.mxu0 0.0
        %604 = vmatpush1.msra.mxu0 0.0
        %605 = vmatprep.subr.mxu0 0.0
        %606 = vmatpush1.msra.mxu0 0.0
        %607 = vmatprep.subr.mxu0 0.0
        %608 = vmatpush1.msra.mxu0 0.0
        %609 = vmatprep.subr.mxu0 0.0
        %610 = vmatpush1.msra.mxu0 0.0
        %611 = vmatprep.subr.mxu0 0.0
        %612 = vmatpush1.msra.mxu0 0.0
        %613 = vmatprep.subr.mxu0 0.0
        %614 = vmatpush1.msra.mxu0 0.0
        %615 = vmatprep.subr.mxu0 0.0
        %616 = vmatpush1.msra.mxu0 0.0
        %617 = vmatprep.subr.mxu0 0.0
        %618 = vmatpush1.msra.mxu0 0.0
        %619 = vmatprep.subr.mxu0 0.0
        %620 = vmatpush1.msra.mxu0 0.0
        %621 = vmatprep.subr.mxu0 %v597
        %622 = vmatpush1.msra.mxu0 %v594
        %623 = vmatprep.subr.mxu0 %v585
        %624 = vmatpush1.msra.mxu0 %v584
        %625 = vmatprep.subr.mxu0 %v583
        %626 = vmatpush1.msra.mxu0 %v582
        %627 = vmatprep.subr.mxu0 %v581
        %628 = vmatpush1.msra.mxu0 %v580
        %629 = vmatprep.subr.mxu0 %v579
        %630 = vmatpush1.msra.mxu0 %v578
        %631 = vmatprep.subr.mxu0 0.0
        %632 = vmatpush2.msra.mxu0 0.0
        %633 = vmatprep.subr.mxu0 0.0
        %634 = vmatpush2.msra.mxu0 0.0
        %635 = vmatprep.subr.mxu0 0.0
        %636 = vmatpush2.msra.mxu0 0.0
        %637 = vmatprep.subr.mxu0 0.0
        %638 = vmatpush2.msra.mxu0 0.0
        %639 = vmatprep.subr.mxu0 0.0
        %640 = vmatpush2.msra.mxu0 0.0
        %641 = vmatprep.subr.mxu0 0.0
        %642 = vmatpush2.msra.mxu0 0.0
        %643 = vmatprep.subr.mxu0 0.0
        %644 = vmatpush2.msra.mxu0 0.0
        %645 = vmatprep.subr.mxu0 0.0
        %646 = vmatpush2.msra.mxu0 0.0
        %647 = vmatprep.subr.mxu0 0.0
        %648 = vmatpush2.msra.mxu0 0.0
        %649 = vmatprep.subr.mxu0 0.0
        %650 = vmatpush2.msra.mxu0 0.0
        %651 = vmatprep.subr.mxu0 0.0
        %652 = vmatpush2.msra.mxu0 0.0
        %653 = vmatprep.subr.mxu0 0.0
        %654 = vmatpush2.msra.mxu0 0.0
        %655 = vmatprep.subr.mxu0 0.0
        %656 = vmatpush2.msra.mxu0 0.0
        %657 = vmatprep.subr.mxu0 0.0
        %658 = vmatpush2.msra.mxu0 0.0
        %659 = vmatprep.subr.mxu0 0.0
        %660 = vmatpush2.msra.mxu0 0.0
        %661 = vmatprep.subr.mxu0 0.0
        %662 = vmatpush2.msra.mxu0 0.0
        %663 = vmatprep.mubr.f32.mxu0 0.0
        %664 = vmatmul.mubr.f32.gmra.mxu0 %v590
        %v665 = vpop.f32.mrf.mxu0
        %v666 = vadd.f32 0.0, %v665
        %v667 = vpop.f32.mrf.mxu0
        %v668 = vadd.f32 0.0, %v667
        %669 = vdwg.mxu0
        %670 = vst [vmem:[%s394 + $0x10] sm:$0x3] %v666
        %671 = vst [vmem:[%s394 + $0x18] sm:$0x3] %v668
        %s672 = scalar_lea.vmem [#allocation7], 2
        %v673 = vld [vmem:[%s672] sm:$0x3]
        %s674 = scalar_lea.vmem [#allocation8], 2
        %v675 = vld [vmem:[%s674] sm:$0x3]
        %677 = vrot.lane.b32.xlu0 %v498, 92
        %v678 = vpop.permute.xlu0 %677
        %v681 = vsel %vm503, %v673, 0
        %683 = vmatprep.subr.mxu0 0.0
        %684 = vmatpush1.msra.mxu0 0.0
        %685 = vmatprep.subr.mxu0 0.0
        %686 = vmatpush1.msra.mxu0 0.0
        %687 = vmatprep.subr.mxu0 0.0
        %688 = vmatpush1.msra.mxu0 0.0
        %689 = vmatprep.subr.mxu0 0.0
        %690 = vmatpush1.msra.mxu0 0.0
        %691 = vmatprep.subr.mxu0 0.0
        %692 = vmatpush1.msra.mxu0 0.0
        %693 = vmatprep.subr.mxu0 0.0
        %694 = vmatpush1.msra.mxu0 0.0
        %695 = vmatprep.subr.mxu0 0.0
        %696 = vmatpush1.msra.mxu0 0.0
        %697 = vmatprep.subr.mxu0 0.0
        %698 = vmatpush1.msra.mxu0 0.0
        %699 = vmatprep.subr.mxu0 0.0
        %700 = vmatpush1.msra.mxu0 0.0
        %701 = vmatprep.subr.mxu0 0.0
        %702 = vmatpush1.msra.mxu0 0.0
        %703 = vmatprep.subr.mxu0 0.0
        %704 = vmatpush1.msra.mxu0 0.0
        %705 = vmatprep.subr.mxu0 0.0
        %706 = vmatpush1.msra.mxu0 0.0
        %707 = vmatprep.subr.mxu0 0.0
        %708 = vmatpush1.msra.mxu0 0.0
        %709 = vmatprep.subr.mxu0 0.0
        %710 = vmatpush1.msra.mxu0 0.0
        %711 = vmatprep.subr.mxu0 0.0
        %712 = vmatpush1.msra.mxu0 0.0
        %713 = vmatprep.subr.mxu0 0.0
        %714 = vmatpush1.msra.mxu0 %v678
        %715 = vmatprep.subr.mxu0 0.0
        %716 = vmatpush2.msra.mxu0 0.0
        %717 = vmatprep.subr.mxu0 0.0
        %718 = vmatpush2.msra.mxu0 0.0
        %719 = vmatprep.subr.mxu0 0.0
        %720 = vmatpush2.msra.mxu0 0.0
        %721 = vmatprep.subr.mxu0 0.0
        %722 = vmatpush2.msra.mxu0 0.0
        %723 = vmatprep.subr.mxu0 0.0
        %724 = vmatpush2.msra.mxu0 0.0
        %725 = vmatprep.subr.mxu0 0.0
        %726 = vmatpush2.msra.mxu0 0.0
        %727 = vmatprep.subr.mxu0 0.0
        %728 = vmatpush2.msra.mxu0 0.0
        %729 = vmatprep.subr.mxu0 0.0
        %730 = vmatpush2.msra.mxu0 0.0
        %731 = vmatprep.subr.mxu0 0.0
        %732 = vmatpush2.msra.mxu0 0.0
        %733 = vmatprep.subr.mxu0 0.0
        %734 = vmatpush2.msra.mxu0 0.0
        %735 = vmatprep.subr.mxu0 0.0
        %736 = vmatpush2.msra.mxu0 0.0
        %737 = vmatprep.subr.mxu0 0.0
        %738 = vmatpush2.msra.mxu0 0.0
        %739 = vmatprep.subr.mxu0 0.0
        %740 = vmatpush2.msra.mxu0 0.0
        %741 = vmatprep.subr.mxu0 0.0
        %742 = vmatpush2.msra.mxu0 0.0
        %743 = vmatprep.subr.mxu0 0.0
        %744 = vmatpush2.msra.mxu0 0.0
        %745 = vmatprep.subr.mxu0 0.0
        %746 = vmatpush2.msra.mxu0 0.0
        %747 = vmatprep.mubr.f32.mxu0 0.0
        %748 = vmatmul.mubr.f32.gmra.mxu0 %v681
        %v749 = vpop.f32.mrf.mxu0
        %v750 = vadd.f32 %v675, %v749
        %v751 = vpop.f32.mrf.mxu0
        %752 = vdwg.mxu0
        %v753 = vmax.f32 %v750, 0.0
        %v754 = vld [vmem:[#allocation11] sm:$0xff]
        %v755 = vld [vmem:[#allocation11 + $0x8] sm:$0xff]
        %v756 = vld [vmem:[#allocation11 + $0x10] sm:$0x1]
        %v757 = vld [vmem:[#allocation11 + $0x18] sm:$0x1]
        %vm758 = vcmask 72704
        %v760 = vsel %vm758, %v753, 0
        %vm762 = vcmask 1040384
        %v764 = vsel %vm762, %v756, 0
        %v767 = vsel %vm762, %v757, 0
        %769 = vmatprep.subr.mxu0 0.0
        %770 = vmatpush1.msra.mxu0 0.0
        %771 = vmatprep.subr.mxu0 0.0
        %772 = vmatpush1.msra.mxu0 0.0
        %773 = vmatprep.subr.mxu0 0.0
        %774 = vmatpush1.msra.mxu0 0.0
        %775 = vmatprep.subr.mxu0 0.0
        %776 = vmatpush1.msra.mxu0 0.0
        %777 = vmatprep.subr.mxu0 0.0
        %778 = vmatpush1.msra.mxu0 0.0
        %779 = vmatprep.subr.mxu0 0.0
        %780 = vmatpush1.msra.mxu0 0.0
        %781 = vmatprep.subr.mxu0 0.0
        %782 = vmatpush1.msra.mxu0 0.0
        %783 = vmatprep.subr.mxu0 0.0
        %784 = vmatpush1.msra.mxu0 0.0
        %785 = vmatprep.subr.mxu0 0.0
        %786 = vmatpush1.msra.mxu0 0.0
        %787 = vmatprep.subr.mxu0 0.0
        %788 = vmatpush1.msra.mxu0 0.0
        %789 = vmatprep.subr.mxu0 0.0
        %790 = vmatpush1.msra.mxu0 0.0
        %791 = vmatprep.subr.mxu0 0.0
        %792 = vmatpush1.msra.mxu0 0.0
        %793 = vmatprep.subr.mxu0 0.0
        %794 = vmatpush1.msra.mxu0 0.0
        %795 = vmatprep.subr.mxu0 0.0
        %796 = vmatpush1.msra.mxu0 0.0
        %797 = vmatprep.subr.mxu0 %v767
        %798 = vmatpush1.msra.mxu0 %v764
        %799 = vmatprep.subr.mxu0 %v755
        %800 = vmatpush1.msra.mxu0 %v754
        %801 = vmatprep.subr.mxu0 0.0
        %802 = vmatpush2.msra.mxu0 0.0
        %803 = vmatprep.subr.mxu0 0.0
        %804 = vmatpush2.msra.mxu0 0.0
        %805 = vmatprep.subr.mxu0 0.0
        %806 = vmatpush2.msra.mxu0 0.0
        %807 = vmatprep.subr.mxu0 0.0
        %808 = vmatpush2.msra.mxu0 0.0
        %809 = vmatprep.subr.mxu0 0.0
        %810 = vmatpush2.msra.mxu0 0.0
        %811 = vmatprep.subr.mxu0 0.0
        %812 = vmatpush2.msra.mxu0 0.0
        %813 = vmatprep.subr.mxu0 0.0
        %814 = vmatpush2.msra.mxu0 0.0
        %815 = vmatprep.subr.mxu0 0.0
        %816 = vmatpush2.msra.mxu0 0.0
        %817 = vmatprep.subr.mxu0 0.0
        %818 = vmatpush2.msra.mxu0 0.0
        %819 = vmatprep.subr.mxu0 0.0
        %820 = vmatpush2.msra.mxu0 0.0
        %821 = vmatprep.subr.mxu0 0.0
        %822 = vmatpush2.msra.mxu0 0.0
        %823 = vmatprep.subr.mxu0 0.0
        %824 = vmatpush2.msra.mxu0 0.0
        %825 = vmatprep.subr.mxu0 0.0
        %826 = vmatpush2.msra.mxu0 0.0
        %827 = vmatprep.subr.mxu0 0.0
        %828 = vmatpush2.msra.mxu0 0.0
        %829 = vmatprep.subr.mxu0 0.0
        %830 = vmatpush2.msra.mxu0 0.0
        %831 = vmatprep.subr.mxu0 0.0
        %832 = vmatpush2.msra.mxu0 0.0
        %833 = vmatprep.mubr.f32.mxu0 0.0
        %834 = vmatmul.mubr.f32.gmra.mxu0 %v760
        %v835 = vpop.f32.mrf.mxu0
        %v836 = vadd.f32 0.0, %v835
        %v837 = vpop.f32.mrf.mxu0
        %v838 = vadd.f32 0.0, %v837
        %839 = vdwg.mxu0
        %v842 = vrot.slane %v836, 6
        %v843 = vrot.slane %v838, 6
        %846 = vst [vmem:[%s394 + $0x10] sm:$0xc] %v842
        %847 = vst [vmem:[%s394 + $0x18] sm:$0xc] %v843
        %s848 = scalar_lea.vmem [#allocation7], 4
        %v849 = vld [vmem:[%s848] sm:$0x3]
        %s850 = scalar_lea.vmem [#allocation8], 4
        %v851 = vld [vmem:[%s850] sm:$0x3]
        %852 = vrot.lane.b32.xlu0 %v498, 83
        %v853 = vpop.permute.xlu0 %852
        %v856 = vsel %vm503, %v849, 0
        %858 = vmatprep.subr.mxu0 0.0
        %859 = vmatpush1.msra.mxu0 0.0
        %860 = vmatprep.subr.mxu0 0.0
        %861 = vmatpush1.msra.mxu0 0.0
        %862 = vmatprep.subr.mxu0 0.0
        %863 = vmatpush1.msra.mxu0 0.0
        %864 = vmatprep.subr.mxu0 0.0
        %865 = vmatpush1.msra.mxu0 0.0
        %866 = vmatprep.subr.mxu0 0.0
        %867 = vmatpush1.msra.mxu0 0.0
        %868 = vmatprep.subr.mxu0 0.0
        %869 = vmatpush1.msra.mxu0 0.0
        %870 = vmatprep.subr.mxu0 0.0
        %871 = vmatpush1.msra.mxu0 0.0
        %872 = vmatprep.subr.mxu0 0.0
        %873 = vmatpush1.msra.mxu0 0.0
        %874 = vmatprep.subr.mxu0 0.0
        %875 = vmatpush1.msra.mxu0 0.0
        %876 = vmatprep.subr.mxu0 0.0
        %877 = vmatpush1.msra.mxu0 0.0
        %878 = vmatprep.subr.mxu0 0.0
        %879 = vmatpush1.msra.mxu0 0.0
        %880 = vmatprep.subr.mxu0 0.0
        %881 = vmatpush1.msra.mxu0 0.0
        %882 = vmatprep.subr.mxu0 0.0
        %883 = vmatpush1.msra.mxu0 0.0
        %884 = vmatprep.subr.mxu0 0.0
        %885 = vmatpush1.msra.mxu0 0.0
        %886 = vmatprep.subr.mxu0 0.0
        %887 = vmatpush1.msra.mxu0 0.0
        %888 = vmatprep.subr.mxu0 0.0
        %889 = vmatpush1.msra.mxu0 %v853
        %890 = vmatprep.subr.mxu0 0.0
        %891 = vmatpush2.msra.mxu0 0.0
        %892 = vmatprep.subr.mxu0 0.0
        %893 = vmatpush2.msra.mxu0 0.0
        %894 = vmatprep.subr.mxu0 0.0
        %895 = vmatpush2.msra.mxu0 0.0
        %896 = vmatprep.subr.mxu0 0.0
        %897 = vmatpush2.msra.mxu0 0.0
        %898 = vmatprep.subr.mxu0 0.0
        %899 = vmatpush2.msra.mxu0 0.0
        %900 = vmatprep.subr.mxu0 0.0
        %901 = vmatpush2.msra.mxu0 0.0
        %902 = vmatprep.subr.mxu0 0.0
        %903 = vmatpush2.msra.mxu0 0.0
        %904 = vmatprep.subr.mxu0 0.0
        %905 = vmatpush2.msra.mxu0 0.0
        %906 = vmatprep.subr.mxu0 0.0
        %907 = vmatpush2.msra.mxu0 0.0
        %908 = vmatprep.subr.mxu0 0.0
        %909 = vmatpush2.msra.mxu0 0.0
        %910 = vmatprep.subr.mxu0 0.0
        %911 = vmatpush2.msra.mxu0 0.0
        %912 = vmatprep.subr.mxu0 0.0
        %913 = vmatpush2.msra.mxu0 0.0
        %914 = vmatprep.subr.mxu0 0.0
        %915 = vmatpush2.msra.mxu0 0.0
        %916 = vmatprep.subr.mxu0 0.0
        %917 = vmatpush2.msra.mxu0 0.0
        %918 = vmatprep.subr.mxu0 0.0
        %919 = vmatpush2.msra.mxu0 0.0
        %920 = vmatprep.subr.mxu0 0.0
        %921 = vmatpush2.msra.mxu0 0.0
        %922 = vmatprep.mubr.f32.mxu0 0.0
        %923 = vmatmul.mubr.f32.gmra.mxu0 %v856
        %v924 = vpop.f32.mrf.mxu0
        %v925 = vadd.f32 %v851, %v924
        %v926 = vpop.f32.mrf.mxu0
        %927 = vdwg.mxu0
        %v928 = vmax.f32 %v925, 0.0
        %v929 = vld [vmem:[%s6] sm:$0xff]
        %v931 = vcombine.high %v929, %v929
        %vm932 = vcmask 31744
        %v934 = vsel %vm932, %v928, 0
        %v936 = vsel %vm592, %v929, 0
        %v938 = vsel %vm592, %v931, 0
        %940 = vmatprep.subr.mxu0 0.0
        %941 = vmatpush1.msra.mxu0 0.0
        %942 = vmatprep.subr.mxu0 0.0
        %943 = vmatpush1.msra.mxu0 0.0
        %944 = vmatprep.subr.mxu0 0.0
        %945 = vmatpush1.msra.mxu0 0.0
        %946 = vmatprep.subr.mxu0 0.0
        %947 = vmatpush1.msra.mxu0 0.0
        %948 = vmatprep.subr.mxu0 0.0
        %949 = vmatpush1.msra.mxu0 0.0
        %950 = vmatprep.subr.mxu0 0.0
        %951 = vmatpush1.msra.mxu0 0.0
        %952 = vmatprep.subr.mxu0 0.0
        %953 = vmatpush1.msra.mxu0 0.0
        %954 = vmatprep.subr.mxu0 0.0
        %955 = vmatpush1.msra.mxu0 0.0
        %956 = vmatprep.subr.mxu0 0.0
        %957 = vmatpush1.msra.mxu0 0.0
        %958 = vmatprep.subr.mxu0 0.0
        %959 = vmatpush1.msra.mxu0 0.0
        %960 = vmatprep.subr.mxu0 0.0
        %961 = vmatpush1.msra.mxu0 0.0
        %962 = vmatprep.subr.mxu0 0.0
        %963 = vmatpush1.msra.mxu0 0.0
        %964 = vmatprep.subr.mxu0 0.0
        %965 = vmatpush1.msra.mxu0 0.0
        %966 = vmatprep.subr.mxu0 0.0
        %967 = vmatpush1.msra.mxu0 0.0
        %968 = vmatprep.subr.mxu0 0.0
        %969 = vmatpush1.msra.mxu0 0.0
        %970 = vmatprep.subr.mxu0 %v938
        %971 = vmatpush1.msra.mxu0 %v936
        %972 = vmatprep.subr.mxu0 0.0
        %973 = vmatpush2.msra.mxu0 0.0
        %974 = vmatprep.subr.mxu0 0.0
        %975 = vmatpush2.msra.mxu0 0.0
        %976 = vmatprep.subr.mxu0 0.0
        %977 = vmatpush2.msra.mxu0 0.0
        %978 = vmatprep.subr.mxu0 0.0
        %979 = vmatpush2.msra.mxu0 0.0
        %980 = vmatprep.subr.mxu0 0.0
        %981 = vmatpush2.msra.mxu0 0.0
        %982 = vmatprep.subr.mxu0 0.0
        %983 = vmatpush2.msra.mxu0 0.0
        %984 = vmatprep.subr.mxu0 0.0
        %985 = vmatpush2.msra.mxu0 0.0
        %986 = vmatprep.subr.mxu0 0.0
        %987 = vmatpush2.msra.mxu0 0.0
        %988 = vmatprep.subr.mxu0 0.0
        %989 = vmatpush2.msra.mxu0 0.0
        %990 = vmatprep.subr.mxu0 0.0
        %991 = vmatpush2.msra.mxu0 0.0
        %992 = vmatprep.subr.mxu0 0.0
        %993 = vmatpush2.msra.mxu0 0.0
        %994 = vmatprep.subr.mxu0 0.0
        %995 = vmatpush2.msra.mxu0 0.0
        %996 = vmatprep.subr.mxu0 0.0
        %997 = vmatpush2.msra.mxu0 0.0
        %998 = vmatprep.subr.mxu0 0.0
        %999 = vmatpush2.msra.mxu0 0.0
        %1000 = vmatprep.subr.mxu0 0.0
        %1001 = vmatpush2.msra.mxu0 0.0
        %1002 = vmatprep.subr.mxu0 0.0
        %1003 = vmatpush2.msra.mxu0 0.0
        %1004 = vmatprep.mubr.f32.mxu0 0.0
        %1005 = vmatmul.mubr.f32.gmra.mxu0 %v934
        %v1006 = vpop.f32.mrf.mxu0
        %v1007 = vadd.f32 0.0, %v1006
        %v1008 = vpop.f32.mrf.mxu0
        %v1009 = vadd.f32 0.0, %v1008
        %1010 = vdwg.mxu0
        %v1013 = vrot.slane %v1007, 4
        %v1014 = vrot.slane %v1009, 4
        %1017 = vst [vmem:[%s394 + $0x10] sm:$0x30] %v1013
        %1018 = vst [vmem:[%s394 + $0x18] sm:$0x30] %v1014
        %s1019 = scalar_lea.vmem [#allocation7], 6
        %v1020 = vld [vmem:[%s1019] sm:$0x3]
        %s1021 = scalar_lea.vmem [#allocation8], 6
        %v1022 = vld [vmem:[%s1021] sm:$0x3]
        %1023 = vrot.lane.b32.xlu0 %v498, 79
        %v1024 = vpop.permute.xlu0 %1023
        %v1027 = vsel %vm503, %v1020, 0
        %1029 = vmatprep.subr.mxu0 0.0
        %1030 = vmatpush1.msra.mxu0 0.0
        %1031 = vmatprep.subr.mxu0 0.0
        %1032 = vmatpush1.msra.mxu0 0.0
        %1033 = vmatprep.subr.mxu0 0.0
        %1034 = vmatpush1.msra.mxu0 0.0
        %1035 = vmatprep.subr.mxu0 0.0
        %1036 = vmatpush1.msra.mxu0 0.0
        %1037 = vmatprep.subr.mxu0 0.0
        %1038 = vmatpush1.msra.mxu0 0.0
        %1039 = vmatprep.subr.mxu0 0.0
        %1040 = vmatpush1.msra.mxu0 0.0
        %1041 = vmatprep.subr.mxu0 0.0
        %1042 = vmatpush1.msra.mxu0 0.0
        %1043 = vmatprep.subr.mxu0 0.0
        %1044 = vmatpush1.msra.mxu0 0.0
        %1045 = vmatprep.subr.mxu0 0.0
        %1046 = vmatpush1.msra.mxu0 0.0
        %1047 = vmatprep.subr.mxu0 0.0
        %1048 = vmatpush1.msra.mxu0 0.0
        %1049 = vmatprep.subr.mxu0 0.0
        %1050 = vmatpush1.msra.mxu0 0.0
        %1051 = vmatprep.subr.mxu0 0.0
        %1052 = vmatpush1.msra.mxu0 0.0
        %1053 = vmatprep.subr.mxu0 0.0
        %1054 = vmatpush1.msra.mxu0 0.0
        %1055 = vmatprep.subr.mxu0 0.0
        %1056 = vmatpush1.msra.mxu0 0.0
        %1057 = vmatprep.subr.mxu0 0.0
        %1058 = vmatpush1.msra.mxu0 0.0
        %1059 = vmatprep.subr.mxu0 0.0
        %1060 = vmatpush1.msra.mxu0 %v1024
        %1061 = vmatprep.subr.mxu0 0.0
        %1062 = vmatpush2.msra.mxu0 0.0
        %1063 = vmatprep.subr.mxu0 0.0
        %1064 = vmatpush2.msra.mxu0 0.0
        %1065 = vmatprep.subr.mxu0 0.0
        %1066 = vmatpush2.msra.mxu0 0.0
        %1067 = vmatprep.subr.mxu0 0.0
        %1068 = vmatpush2.msra.mxu0 0.0
        %1069 = vmatprep.subr.mxu0 0.0
        %1070 = vmatpush2.msra.mxu0 0.0
        %1071 = vmatprep.subr.mxu0 0.0
        %1072 = vmatpush2.msra.mxu0 0.0
        %1073 = vmatprep.subr.mxu0 0.0
        %1074 = vmatpush2.msra.mxu0 0.0
        %1075 = vmatprep.subr.mxu0 0.0
        %1076 = vmatpush2.msra.mxu0 0.0
        %1077 = vmatprep.subr.mxu0 0.0
        %1078 = vmatpush2.msra.mxu0 0.0
        %1079 = vmatprep.subr.mxu0 0.0
        %1080 = vmatpush2.msra.mxu0 0.0
        %1081 = vmatprep.subr.mxu0 0.0
        %1082 = vmatpush2.msra.mxu0 0.0
        %1083 = vmatprep.subr.mxu0 0.0
        %1084 = vmatpush2.msra.mxu0 0.0
        %1085 = vmatprep.subr.mxu0 0.0
        %1086 = vmatpush2.msra.mxu0 0.0
        %1087 = vmatprep.subr.mxu0 0.0
        %1088 = vmatpush2.msra.mxu0 0.0
        %1089 = vmatprep.subr.mxu0 0.0
        %1090 = vmatpush2.msra.mxu0 0.0
        %1091 = vmatprep.subr.mxu0 0.0
        %1092 = vmatpush2.msra.mxu0 0.0
        %1093 = vmatprep.mubr.f32.mxu0 0.0
        %1094 = vmatmul.mubr.f32.gmra.mxu0 %v1027
        %v1095 = vpop.f32.mrf.mxu0
        %v1096 = vadd.f32 %v1022, %v1095
        %v1097 = vpop.f32.mrf.mxu0
        %1098 = vdwg.mxu0
        %v1099 = vmax.f32 %v1096, 0.0
        %v1100 = vld [vmem:[%s7] sm:$0x3]
        %v1102 = vlaneseq
        %v1103 = vshrl.u32 %v1102, 7
        %v1104 = vsub.s32 0, %v1103
        %v1105 = vrot.slane %v1100, %v1104
        %v1106 = vlaneseq
        %v1107 = vshrl.u32 %v1106, 7
        %v1108 = vsub.s32 1, %v1107
        %v1109 = vrot.slane %v1100, %v1108
        %vm1110 = vcmask 7168
        %v1112 = vsel %vm1110, %v1099, 0
        %v1114 = vsel %vm762, %v1105, 0
        %v1116 = vsel %vm762, %v1109, 0
        %1118 = vmatprep.subr.mxu0 0.0
        %1119 = vmatpush1.msra.mxu0 0.0
        %1120 = vmatprep.subr.mxu0 0.0
        %1121 = vmatpush1.msra.mxu0 0.0
        %1122 = vmatprep.subr.mxu0 0.0
        %1123 = vmatpush1.msra.mxu0 0.0
        %1124 = vmatprep.subr.mxu0 0.0
        %1125 = vmatpush1.msra.mxu0 0.0
        %1126 = vmatprep.subr.mxu0 0.0
        %1127 = vmatpush1.msra.mxu0 0.0
        %1128 = vmatprep.subr.mxu0 0.0
        %1129 = vmatpush1.msra.mxu0 0.0
        %1130 = vmatprep.subr.mxu0 0.0
        %1131 = vmatpush1.msra.mxu0 0.0
        %1132 = vmatprep.subr.mxu0 0.0
        %1133 = vmatpush1.msra.mxu0 0.0
        %1134 = vmatprep.subr.mxu0 0.0
        %1135 = vmatpush1.msra.mxu0 0.0
        %1136 = vmatprep.subr.mxu0 0.0
        %1137 = vmatpush1.msra.mxu0 0.0
        %1138 = vmatprep.subr.mxu0 0.0
        %1139 = vmatpush1.msra.mxu0 0.0
        %1140 = vmatprep.subr.mxu0 0.0
        %1141 = vmatpush1.msra.mxu0 0.0
        %1142 = vmatprep.subr.mxu0 0.0
        %1143 = vmatpush1.msra.mxu0 0.0
        %1144 = vmatprep.subr.mxu0 0.0
        %1145 = vmatpush1.msra.mxu0 0.0
        %1146 = vmatprep.subr.mxu0 0.0
        %1147 = vmatpush1.msra.mxu0 0.0
        %1148 = vmatprep.subr.mxu0 %v1116
        %1149 = vmatpush1.msra.mxu0 %v1114
        %1150 = vmatprep.subr.mxu0 0.0
        %1151 = vmatpush2.msra.mxu0 0.0
        %1152 = vmatprep.subr.mxu0 0.0
        %1153 = vmatpush2.msra.mxu0 0.0
        %1154 = vmatprep.subr.mxu0 0.0
        %1155 = vmatpush2.msra.mxu0 0.0
        %1156 = vmatprep.subr.mxu0 0.0
        %1157 = vmatpush2.msra.mxu0 0.0
        %1158 = vmatprep.subr.mxu0 0.0
        %1159 = vmatpush2.msra.mxu0 0.0
        %1160 = vmatprep.subr.mxu0 0.0
        %1161 = vmatpush2.msra.mxu0 0.0
        %1162 = vmatprep.subr.mxu0 0.0
        %1163 = vmatpush2.msra.mxu0 0.0
        %1164 = vmatprep.subr.mxu0 0.0
        %1165 = vmatpush2.msra.mxu0 0.0
        %1166 = vmatprep.subr.mxu0 0.0
        %1167 = vmatpush2.msra.mxu0 0.0
        %1168 = vmatprep.subr.mxu0 0.0
        %1169 = vmatpush2.msra.mxu0 0.0
        %1170 = vmatprep.subr.mxu0 0.0
        %1171 = vmatpush2.msra.mxu0 0.0
        %1172 = vmatprep.subr.mxu0 0.0
        %1173 = vmatpush2.msra.mxu0 0.0
        %1174 = vmatprep.subr.mxu0 0.0
        %1175 = vmatpush2.msra.mxu0 0.0
        %1176 = vmatprep.subr.mxu0 0.0
        %1177 = vmatpush2.msra.mxu0 0.0
        %1178 = vmatprep.subr.mxu0 0.0
        %1179 = vmatpush2.msra.mxu0 0.0
        %1180 = vmatprep.subr.mxu0 0.0
        %1181 = vmatpush2.msra.mxu0 0.0
        %1182 = vmatprep.mubr.f32.mxu0 0.0
        %1183 = vmatmul.mubr.f32.gmra.mxu0 %v1112
        %v1184 = vpop.f32.mrf.mxu0
        %v1185 = vadd.f32 0.0, %v1184
        %v1186 = vpop.f32.mrf.mxu0
        %v1187 = vadd.f32 0.0, %v1186
        %1188 = vdwg.mxu0
        %v1191 = vrot.slane %v1185, 2
        %v1192 = vrot.slane %v1187, 2
        %1195 = vst [vmem:[%s394 + $0x10] sm:$0xc0] %v1191
        %1196 = vst [vmem:[%s394 + $0x18] sm:$0xc0] %v1192
        %s1197 = sand.u32 %s209, 1
        %s1198 = scalar_lea.sflag [#allocation4], %s1197
        %s1199 = sand.u32 %s209, 1
        %s1200 = smul.addr %s1199, 32
        %s1201 = scalar_lea.vmem [#allocation13], %s1200
        // Predicated region
        $region77: #{forward.1} parent=51 // pred_check
          %p1202 = pneg %p219
        $region78: #{forward.1} parent=51 // pred_check_branch
          %1204 = sbr.rel (%p1202) target = $region80
        $region79: #{forward.1} parent=51 // pred_region
          %s1206 = ssub.s32 512, 512
          %1207 = vsyncadd %s1198, %s1206
          %s1208 = smul.addr %s28, 4
          %s1209 = smul.addr %s1208, 128
          %s1210 = scalar_lea.hbm %s8, %s1209
          %s1211 = sshll.u32 %s1201, 4
          %s1212 = int_to_ptr.vmem [resolvable:$true] %s1211
          %1217 = dma.vmem_to_hbm [thread:$0]  %s1212, 512, %s1210, %s1198, 256, 256, 16
        $region80: #{forward.1} parent=51 // pred_fallthru
          _
      $region52: #{forward.1} parent=5 // pred_fallthru
        _
      %p1218 = scmp.le.s32.totalorder 2, %s23
      // Predicated region
      $region81: #{forward.1} parent=5 // pred_check
        %p1219 = pneg %p1218
      $region82: #{forward.1} parent=5 // pred_check_branch
        %1221 = sbr.rel (%p1219) target = $region84
      $region83: #{forward.1} parent=5 // pred_region
        %s1222 = ssub.s32 %s23, 2
        // Predicated region
        $region85: #{forward.1} parent=83 // pred_check
          %p1223 = pneg %p225
        $region86: #{forward.1} parent=83 // pred_check_branch
          %1225 = sbr.rel (%p1223) target = $region88
        $region87: #{forward.1} parent=83 // pred_region
          %s1226 = sand.u32 %s210, 1
          %s1227 = scalar_lea.sflag [#allocation4], %s1226
          %s1228 = sand.u32 %s210, 1
          %s1229 = smul.addr %s1228, 32
          %s1230 = scalar_lea.vmem [#allocation13], %s1229
          %1231 = dma.done %s1227, 512
        $region88: #{forward.1} parent=83 // pred_fallthru
          _
      $region84: #{forward.1} parent=5 // pred_fallthru
        _
    $region6: #{forward.1} parent=1 // loop_footer
      %s27 = sadd.s32 1, %s23
    $region7: #{forward.1} parent=1 // loop_footer_branch
      %22 = sbr.rel target = $region3
    $region8: #{forward.1} parent=1 // loop_exit
      _
    %1232 = vsyncpa [#allocation3], 1
    %s1233 = scalar_lea.sflag [#allocation3], 1
    %1234 = vsyncpa %s1233, 1
    %1235 = vsyncpa [#allocation6], 1
    %1236 = vsyncpa [#allocation9], 1
    %1237 = vsyncpa [#allocation12], 1
    %1238 = vsyncpa [#allocation4], 1
    %s1239 = scalar_lea.sflag [#allocation4], 1
    %1240 = vsyncpa %s1239, 1

</llo_original>
